<compile_context>
chip_gen: v5e
topology: v5e:2x2
jax: 0.10.0
libtpu: 0.0.40
codegen_flags: <defaults>
</compile_context>

<pallas_src>
import functools

import jax
import jax.numpy as jnp
from jax.experimental import pallas as pl
from jax.experimental.pallas import tpu as pltpu


# ----------------------------------------------------------------------------
# Kernels
# ----------------------------------------------------------------------------
def _bigru_layer_kernel(*refs, n_parts, mm_dtype):
    """Fused bidirectional single-layer GRU over one time chunk of the grid.

    Grid: (num_chunks,), sequential ("arbitrary"); hidden state carried in
    VMEM scratch across grid steps.  Forward direction consumes chunk i,
    reverse direction consumes chunk (num_chunks - 1 - i).

    refs (in order):
      inputs : xf_p (n_parts)  (Tc, B, D_p)   chunk i           (fwd input parts)
               xr_p (n_parts)  (Tc, B, D_p)   chunk N-1-i       (rev input parts)
               h0              (2, B, H)  f32  initial hidden (fwd, rev)
               wih             (2, D, 3H) mm   packed input weights, gates (r,z,n)
               whh             (2, 3, H, H) mm per-gate recurrent weights
               bih             (2, 1, 3H) f32
               bhh             (2, 3, 1, H) f32
      outputs: yf (Tc, B, H) mm  chunk i     yr (Tc, B, H) mm  chunk N-1-i
               hT (2, B, H) f32  (resident block, final hidden)
      scratch: h_scr (2, B, H) f32
               gxf_r/z/n, gxr_r/z/n (Tc, B, H) f32   hoisted input projections
    """
    xf_refs = refs[:n_parts]
    xr_refs = refs[n_parts:2 * n_parts]
    (h0_ref, wih_ref, whh_ref, bih_ref, bhh_ref,
     yf_ref, yr_ref, hT_ref,
     h_scr, gxf_r, gxf_z, gxf_n, gxr_r, gxr_z, gxr_n) = refs[2 * n_parts:]

    Tc, B, H = yf_ref.shape
    in_dims = [int(r.shape[-1]) for r in xf_refs]
    i = pl.program_id(0)

    # --- first chunk: load initial hidden state into the carried scratch ----
    @pl.when(i == 0)
    def _init():
        h_scr[...] = h0_ref[...]

    bih = bih_ref[...]                      # (2, 1, 3H)  f32
    bhh = bhh_ref[...]                      # (2, 3, 1, H) f32

    # --- hoisted input projection: ONE big MXU matmul per direction/chunk ---
    def project(x_refs, d, g_r, g_z, g_n):
        wih_d = wih_ref[d]                  # (D_total, 3H), mm_dtype
        acc = None
        off = 0
        for p, dp in enumerate(in_dims):
            xp = x_refs[p][...].reshape(Tc * B, dp).astype(mm_dtype)
            part = jnp.dot(xp, wih_d[off:off + dp, :],
                           preferred_element_type=jnp.float32)
            acc = part if acc is None else acc + part
            off += dp
        acc = acc + bih[d]                  # fold b_ih in, once per chunk
        # split per gate ONCE per chunk; store lane-dense (H on lanes)
        g_r[...] = acc[:, 0:H].reshape(Tc, B, H)
        g_z[...] = acc[:, H:2 * H].reshape(Tc, B, H)
        g_n[...] = acc[:, 2 * H:3 * H].reshape(Tc, B, H)

    project(xf_refs, 0, gxf_r, gxf_z, gxf_n)
    project(xr_refs, 1, gxr_r, gxr_z, gxr_n)

    # --- hoist loop-invariant weight loads / bias broadcasts ----------------
    whh = [[whh_ref[d, g] for g in range(3)] for d in range(2)]          # (H, H)
    bhh_b = [[jnp.broadcast_to(bhh[d, g], (B, H)) for g in range(3)]
             for d in range(2)]                                          # (B, H)

    def gru_cell(h, gx_r, gx_z, gx_n, d):
        h_mm = h.astype(mm_dtype)
        gh_r = jnp.dot(h_mm, whh[d][0], preferred_element_type=jnp.float32) + bhh_b[d][0]
        gh_z = jnp.dot(h_mm, whh[d][1], preferred_element_type=jnp.float32) + bhh_b[d][1]
        gh_n = jnp.dot(h_mm, whh[d][2], preferred_element_type=jnp.float32) + bhh_b[d][2]
        r = jax.nn.sigmoid(gx_r + gh_r)
        z = jax.nn.sigmoid(gx_z + gh_z)
        n = jnp.tanh(gx_n + r * gh_n)       # b_hh_n stays inside r * (.)  (PyTorch)
        return (1.0 - z) * n + z * h

    def step(t, carry):
        h_f, h_r = carry
        tr = Tc - 1 - t
        # two independent recurrences -> MXU/EUP latencies interleave
        h_f = gru_cell(h_f, gxf_r[t], gxf_z[t], gxf_n[t], 0)
        h_r = gru_cell(h_r, gxr_r[tr], gxr_z[tr], gxr_n[tr], 1)
        yf_ref[t] = h_f.astype(yf_ref.dtype)
        yr_ref[tr] = h_r.astype(yr_ref.dtype)
        return (h_f, h_r)

    h_f, h_r = jax.lax.fori_loop(0, Tc, step, (h_scr[0], h_scr[1]))

    h_scr[0] = h_f
    h_scr[1] = h_r
    hT_ref[0] = h_f
    hT_ref[1] = h_r


def _dense_head_kernel(yf_ref, yr_ref, wf_ref, wr_ref, b_ref, o_ref):
    """out = yf @ Wf + yr @ Wr + b  (row-partitioned W avoids a concat)."""
    Tc, B, H = yf_ref.shape
    yf = yf_ref[...].reshape(Tc * B, H)
    yr = yr_ref[...].reshape(Tc * B, H)
    acc = jnp.dot(yf, wf_ref[...], preferred_element_type=jnp.float32)
    acc = acc + jnp.dot(yr, wr_ref[...], preferred_element_type=jnp.float32)
    acc = acc + b_ref[...]
    o_ref[...] = acc.reshape(Tc, B, o_ref.shape[-1]).astype(o_ref.dtype)


# ----------------------------------------------------------------------------
# Wrappers
# ----------------------------------------------------------------------------
def _pick_time_chunk(T, target):
    """Largest divisor of T that is <= target (keeps chunks exact)."""
    tc = max(1, min(T, int(target)))
    while T % tc:
        tc -= 1
    return tc


def bigru_layer(x_parts, h0, params, *, time_chunk, mm_dtype):
    """One fused bidirectional GRU layer.

    x_parts : list of time-major arrays (T, B, D_p) (concatenated feature-wise
              via row-partitioned W_ih — no actual concat is materialized).
    h0      : (2, B, H) float32 initial hidden (fwd, rev).
    Returns (y_fwd (T,B,H), y_rev (T,B,H), hT (2,B,H)).
    """
    wih, whh, bih, bhh = params
    T, B, _ = x_parts[0].shape
    H = h0.shape[-1]
    in_dims = tuple(int(p.shape[-1]) for p in x_parts)
    n_parts = len(x_parts)
    Tc = _pick_time_chunk(T, time_chunk)
    nchunks = T // Tc

    def fwd_map(i):
        return (i, 0, 0)

    def rev_map(i):
        return (nchunks - 1 - i, 0, 0)

    def full(shape):
        return pl.BlockSpec(tuple(shape), lambda i, _n=len(shape): (0,) * _n)

    kernel = functools.partial(_bigru_layer_kernel, n_parts=n_parts,
                               mm_dtype=mm_dtype)
    yf, yr, hT = pl.pallas_call(
        kernel,
        grid=(nchunks,),
        in_specs=([pl.BlockSpec((Tc, B, d), fwd_map) for d in in_dims]
                  + [pl.BlockSpec((Tc, B, d), rev_map) for d in in_dims]
                  + [full(h0.shape), full(wih.shape), full(whh.shape),
                     full(bih.shape), full(bhh.shape)]),
        out_specs=(pl.BlockSpec((Tc, B, H), fwd_map),
                   pl.BlockSpec((Tc, B, H), rev_map),
                   full((2, B, H))),
        out_shape=(jax.ShapeDtypeStruct((T, B, H), mm_dtype),
                   jax.ShapeDtypeStruct((T, B, H), mm_dtype),
                   jax.ShapeDtypeStruct((2, B, H), jnp.float32)),
        scratch_shapes=([pltpu.VMEM((2, B, H), jnp.float32)]
                        + [pltpu.VMEM((Tc, B, H), jnp.float32)] * 6),
        compiler_params=pltpu.CompilerParams(
            dimension_semantics=("arbitrary",)),   # state carried across chunks
    )(*x_parts, *x_parts, h0, wih, whh, bih, bhh)
    return yf, yr, hT


def dense_head(yf, yr, wf, wr, b, num_classes, *, time_chunk):
    """Linear head on (y_fwd | y_rev); output lanes padded to 128, sliced after."""
    T, B, H = yf.shape
    Cp = wf.shape[-1]
    Tc = _pick_time_chunk(T, time_chunk)
    nchunks = T // Tc
    o = pl.pallas_call(
        _dense_head_kernel,
        grid=(nchunks,),
        in_specs=[pl.BlockSpec((Tc, B, H), lambda i: (i, 0, 0)),
                  pl.BlockSpec((Tc, B, H), lambda i: (i, 0, 0)),
                  pl.BlockSpec((H, Cp), lambda i: (0, 0)),
                  pl.BlockSpec((H, Cp), lambda i: (0, 0)),
                  pl.BlockSpec((1, Cp), lambda i: (0, 0))],
        out_specs=pl.BlockSpec((Tc, B, Cp), lambda i: (i, 0, 0)),
        out_shape=jax.ShapeDtypeStruct((T, B, Cp), jnp.float32),
        compiler_params=pltpu.CompilerParams(
            dimension_semantics=("parallel",)),
    )(yf, yr, wf, wr, b)
    return o[:, :, :num_classes]


# ----------------------------------------------------------------------------
# Parameter construction (deterministic; mirrors nn.GRU / nn.Linear semantics)
# ----------------------------------------------------------------------------
def _uniform(key, shape, bound, dtype=jnp.float32):
    return jax.random.uniform(key, shape, jnp.float32, -bound, bound).astype(dtype)


def make_bigru_params(key, input_size, hidden_size, num_layers, mm_dtype):
    """Per layer: wih (2, D_in, 3H) mm, whh (2, 3, H, H) mm, bih (2,1,3H) f32,
    bhh (2,3,1,H) f32.  Gate order (r, z, n); direction 0 = fwd, 1 = rev."""
    params = []
    bound = 1.0 / float(hidden_size) ** 0.5
    for layer in range(num_layers):
        d_in = input_size if layer == 0 else 2 * hidden_size
        key, k1, k2, k3, k4 = jax.random.split(key, 5)
        params.append((
            _uniform(k1, (2, d_in, 3 * hidden_size), bound, mm_dtype),
            _uniform(k2, (2, 3, hidden_size, hidden_size), bound, mm_dtype),
            _uniform(k3, (2, 1, 3 * hidden_size), bound),
            _uniform(k4, (2, 3, 1, hidden_size), bound),
        ))
    return params, key


class TransducerGRUPallas:
    def __init__(self, image_channels, image_features, gru_layers, hidden_size,
                 num_classes, key, bidirectional=True,
                 mm_dtype=jnp.bfloat16,      # use jnp.float32 on v5e
                 time_chunk=128):            # re-derive for v7x (64 MiB VMEM)
        assert bidirectional, "module is used with bidirectional=True"
        self.hidden_size = hidden_size
        self.num_layers = gru_layers
        self.num_classes = num_classes
        self.mm_dtype = mm_dtype
        self.time_chunk = time_chunk
        # image_channels is unused in the PyTorch forward as well.
        self.enc_params, key = make_bigru_params(key, image_features, hidden_size,
                                                 gru_layers, mm_dtype)
        self.dec_params, key = make_bigru_params(key, 2 * hidden_size, hidden_size,
                                                 gru_layers, mm_dtype)
        key, kw, kb = jax.random.split(key, 3)
        cpad = ((num_classes + 127) // 128) * 128
        bound = 1.0 / float(2 * hidden_size) ** 0.5
        w = _uniform(kw, (2 * hidden_size, num_classes), bound)
        b = _uniform(kb, (1, num_classes), bound)
        w_pad = jnp.zeros((2 * hidden_size, cpad), jnp.float32)
        w_pad = w_pad.at[:, :num_classes].set(w)
        self.dense_wf = w_pad[:hidden_size].astype(mm_dtype)   # applied to y_fwd
        self.dense_wr = w_pad[hidden_size:].astype(mm_dtype)   # applied to y_rev
        self.dense_b = jnp.zeros((1, cpad), jnp.float32).at[:, :num_classes].set(b)

    def init_hidden(self, batch_size):
        return jnp.zeros((batch_size, 2 * self.num_layers, self.hidden_size),
                         jnp.float32)

    def _run_stack(self, parts, h0, params):
        hn = []
        for layer in range(self.num_layers):
            yf, yr, hT = bigru_layer(parts, h0[2 * layer:2 * layer + 2],
                                     params[layer],
                                     time_chunk=self.time_chunk,
                                     mm_dtype=self.mm_dtype)
            parts = [yf, yr]                 # no concat / transpose between layers
            hn.append(hT)
        return parts, jnp.concatenate(hn, axis=0)     # (L*2, B, H)

    def __call__(self, x, hidden):
        # x: (B, T, F) batch-first; hidden: (B, L*2, H)  (PyTorch layout)
        h0 = jnp.transpose(hidden, (1, 0, 2))          # (L*2, B, H)
        x_tm = jnp.transpose(x, (1, 0, 2))             # single transpose at entry
        parts, h_enc = self._run_stack([x_tm], h0, self.enc_params)
        parts, h_dec = self._run_stack(parts, h_enc, self.dec_params)
        o = dense_head(parts[0], parts[1], self.dense_wf, self.dense_wr,
                       self.dense_b, self.num_classes,
                       time_chunk=self.time_chunk)     # (T, B, C)
        x_pred = jnp.transpose(o, (1, 0, 2))           # single transpose at exit
        hidden_final = jnp.transpose(h_dec, (1, 0, 2))  # (B, L*2, H)
        return x_pred, hidden_final


# ----------------------------------------------------------------------------
if __name__ == "__main__":
    key = jax.random.PRNGKey(0)

    batch = 2
    seq = 8
    image_channels = 1      # unused in forward (matches PyTorch module)
    image_features = 16
    gru_layers = 2
    hidden_size = 32
    num_classes = 5

    key, k_model, k_x = jax.random.split(key, 3)
    model = TransducerGRUPallas(image_channels, image_features, gru_layers,
                                hidden_size, num_classes, k_model,
                                time_chunk=4)   # 2 time chunks -> exercises the
                                                # streamed/carried-state grid path
    x = jax.random.normal(k_x, (batch, seq, image_features), jnp.float32)
    hidden = model.init_hidden(batch)

    x_pred, hidden_final = model(x, hidden)
    jax.block_until_ready((x_pred, hidden_final))

    assert x_pred.shape == (batch, seq, num_classes)
    assert hidden_final.shape == (batch, 2 * gru_layers, hidden_size)
    assert bool(jnp.all(jnp.isfinite(x_pred))) and bool(jnp.all(jnp.isfinite(hidden_final)))
    print("KERNEL_OK")
</pallas_src>

<mosaic_0001>
module attributes {stable_mosaic.version = 11 : i64} {
  func.func @_bigru_layer_kernel(%arg0: i32, %arg1: memref<4x2x16xf32, #tpu.memory_space<vmem>>, %arg2: memref<4x2x16xf32, #tpu.memory_space<vmem>>, %arg3: memref<2x2x32xf32, #tpu.memory_space<vmem>>, %arg4: memref<2x16x96xbf16, #tpu.memory_space<vmem>>, %arg5: memref<2x3x32x32xbf16, #tpu.memory_space<vmem>>, %arg6: memref<2x1x96xf32, #tpu.memory_space<vmem>>, %arg7: memref<2x3x1x32xf32, #tpu.memory_space<vmem>>, %arg8: memref<4x2x32xbf16, #tpu.memory_space<vmem>>, %arg9: memref<4x2x32xbf16, #tpu.memory_space<vmem>>, %arg10: memref<2x2x32xf32, #tpu.memory_space<vmem>>, %arg11: memref<2x2x32xf32, #tpu.memory_space<vmem>>, %arg12: memref<4x2x32xf32, #tpu.memory_space<vmem>>, %arg13: memref<4x2x32xf32, #tpu.memory_space<vmem>>, %arg14: memref<4x2x32xf32, #tpu.memory_space<vmem>>, %arg15: memref<4x2x32xf32, #tpu.memory_space<vmem>>, %arg16: memref<4x2x32xf32, #tpu.memory_space<vmem>>, %arg17: memref<4x2x32xf32, #tpu.memory_space<vmem>>) attributes {dimension_semantics = [#tpu.dimension_semantics<arbitrary>], iteration_bounds = array<i64: 2>, scalar_prefetch = 0 : i64, scratch_operands = 7 : i64, tpu.core_type = #tpu.core_type<tc>, window_params = [{transform_indices = @transform_0, window_bounds = array<i64: 4, 2, 16>}, {transform_indices = @transform_1, window_bounds = array<i64: 4, 2, 16>}, {pipeline_mode = #tpu.pipeline_mode<synchronous>, transform_indices = @transform_2, window_bounds = array<i64: 2, 2, 32>}, {pipeline_mode = #tpu.pipeline_mode<synchronous>, transform_indices = @transform_3, window_bounds = array<i64: 2, 16, 96>}, {pipeline_mode = #tpu.pipeline_mode<synchronous>, transform_indices = @transform_4, window_bounds = array<i64: 2, 3, 32, 32>}, {pipeline_mode = #tpu.pipeline_mode<synchronous>, transform_indices = @transform_5, window_bounds = array<i64: 2, 1, 96>}, {pipeline_mode = #tpu.pipeline_mode<synchronous>, transform_indices = @transform_6, window_bounds = array<i64: 2, 3, 1, 32>}, {transform_indices = @transform_7, window_bounds = array<i64: 4, 2, 32>}, {transform_indices = @transform_8, window_bounds = array<i64: 4, 2, 32>}, {pipeline_mode = #tpu.pipeline_mode<synchronous>, transform_indices = @transform_9, window_bounds = array<i64: 2, 2, 32>}]} {
    %c0_i32 = arith.constant 0 : i32
    %0 = arith.cmpi eq, %arg0, %c0_i32 : i32
    %1 = arith.extui %0 : i1 to i32
    %c0_i32_0 = arith.constant 0 : i32
    %2 = arith.cmpi ne, %1, %c0_i32_0 : i32
    scf.if %2 {
      %c0_80 = arith.constant 0 : index
      %c0_81 = arith.constant 0 : index
      %c0_82 = arith.constant 0 : index
      %97 = vector.load %arg3[%c0_80, %c0_81, %c0_82] : memref<2x2x32xf32, #tpu.memory_space<vmem>>, vector<2x2x32xf32>
      %c0_83 = arith.constant 0 : index
      %c0_84 = arith.constant 0 : index
      %c0_85 = arith.constant 0 : index
      %98 = vector.load %arg11[%c0_83, %c0_84, %c0_85] : memref<2x2x32xf32, #tpu.memory_space<vmem>>, vector<2x2x32xf32>
      tpu.vector_store %arg11[%c0_83, %c0_84, %c0_85], %97 {strides = array<i32>} : memref<2x2x32xf32, #tpu.memory_space<vmem>>, vector<2x2x32xf32>,
    } else {
    }
    %c0 = arith.constant 0 : index
    %c0_1 = arith.constant 0 : index
    %c0_2 = arith.constant 0 : index
    %3 = vector.load %arg6[%c0, %c0_1, %c0_2] : memref<2x1x96xf32, #tpu.memory_space<vmem>>, vector<2x1x96xf32>
    %c0_3 = arith.constant 0 : index
    %c0_4 = arith.constant 0 : index
    %c0_5 = arith.constant 0 : index
    %c0_6 = arith.constant 0 : index
    %4 = vector.load %arg7[%c0_3, %c0_4, %c0_5, %c0_6] : memref<2x3x1x32xf32, #tpu.memory_space<vmem>>, vector<2x3x1x32xf32>
    %c0_7 = arith.constant 0 : index
    %c0_8 = arith.constant 0 : index
    %c0_9 = arith.constant 0 : index
    %5 = vector.load %arg4[%c0_7, %c0_8, %c0_9] : memref<2x16x96xbf16, #tpu.memory_space<vmem>>, vector<1x16x96xbf16>
    %6 = vector.shape_cast %5 : vector<1x16x96xbf16> to vector<16x96xbf16>
    %c0_10 = arith.constant 0 : index
    %c0_11 = arith.constant 0 : index
    %c0_12 = arith.constant 0 : index
    %7 = vector.load %arg1[%c0_10, %c0_11, %c0_12] : memref<4x2x16xf32, #tpu.memory_space<vmem>>, vector<4x2x16xf32>
    %8 = vector.shape_cast %7 : vector<4x2x16xf32> to vector<8x16xf32>
    %9 = arith.truncf %8 : vector<8x16xf32> to vector<8x16xbf16>
    %cst = arith.constant dense<0.000000e+00> : vector<8x96xf32>
    %10 = tpu.matmul %9, %6, %cst {dimension_numbers = #tpu.dot_dimension_numbers<[1], [0], [0], [1], [0, 0, 1, 1], [], []>} : vector<8x16xbf16>, vector<16x96xbf16>, vector<8x96xf32> -> vector<8x96xf32>
    %11 = vector.extract_strided_slice %3 {offsets = [0, 0, 0], sizes = [1, 1, 96], strides = [1, 1, 1]} : vector<2x1x96xf32> to vector<1x1x96xf32>
    %12 = vector.shape_cast %11 : vector<1x1x96xf32> to vector<1x96xf32>
    %13 = vector.broadcast %12 : vector<1x96xf32> to vector<8x96xf32>
    %14 = arith.addf %10, %13 : vector<8x96xf32>
    %15 = vector.extract_strided_slice %14 {offsets = [0, 0], sizes = [8, 32], strides = [1, 1]} : vector<8x96xf32> to vector<8x32xf32>
    %16 = vector.shape_cast %15 : vector<8x32xf32> to vector<4x2x32xf32>
    %c0_13 = arith.constant 0 : index
    %c0_14 = arith.constant 0 : index
    %c0_15 = arith.constant 0 : index
    %17 = vector.load %arg12[%c0_13, %c0_14, %c0_15] : memref<4x2x32xf32, #tpu.memory_space<vmem>>, vector<4x2x32xf32>
    tpu.vector_store %arg12[%c0_13, %c0_14, %c0_15], %16 {strides = array<i32>} : memref<4x2x32xf32, #tpu.memory_space<vmem>>, vector<4x2x32xf32>,
    %18 = vector.extract_strided_slice %14 {offsets = [0, 32], sizes = [8, 32], strides = [1, 1]} : vector<8x96xf32> to vector<8x32xf32>
    %19 = vector.shape_cast %18 : vector<8x32xf32> to vector<4x2x32xf32>
    %c0_16 = arith.constant 0 : index
    %c0_17 = arith.constant 0 : index
    %c0_18 = arith.constant 0 : index
    %20 = vector.load %arg13[%c0_16, %c0_17, %c0_18] : memref<4x2x32xf32, #tpu.memory_space<vmem>>, vector<4x2x32xf32>
    tpu.vector_store %arg13[%c0_16, %c0_17, %c0_18], %19 {strides = array<i32>} : memref<4x2x32xf32, #tpu.memory_space<vmem>>, vector<4x2x32xf32>,
    %21 = vector.extract_strided_slice %14 {offsets = [0, 64], sizes = [8, 32], strides = [1, 1]} : vector<8x96xf32> to vector<8x32xf32>
    %22 = vector.shape_cast %21 : vector<8x32xf32> to vector<4x2x32xf32>
    %c0_19 = arith.constant 0 : index
    %c0_20 = arith.constant 0 : index
    %c0_21 = arith.constant 0 : index
    %23 = vector.load %arg14[%c0_19, %c0_20, %c0_21] : memref<4x2x32xf32, #tpu.memory_space<vmem>>, vector<4x2x32xf32>
    tpu.vector_store %arg14[%c0_19, %c0_20, %c0_21], %22 {strides = array<i32>} : memref<4x2x32xf32, #tpu.memory_space<vmem>>, vector<4x2x32xf32>,
    %c1 = arith.constant 1 : index
    %c0_22 = arith.constant 0 : index
    %c0_23 = arith.constant 0 : index
    %24 = vector.load %arg4[%c1, %c0_22, %c0_23] : memref<2x16x96xbf16, #tpu.memory_space<vmem>>, vector<1x16x96xbf16>
    %25 = vector.shape_cast %24 : vector<1x16x96xbf16> to vector<16x96xbf16>
    %c0_24 = arith.constant 0 : index
    %c0_25 = arith.constant 0 : index
    %c0_26 = arith.constant 0 : index
    %26 = vector.load %arg2[%c0_24, %c0_25, %c0_26] : memref<4x2x16xf32, #tpu.memory_space<vmem>>, vector<4x2x16xf32>
    %27 = vector.shape_cast %26 : vector<4x2x16xf32> to vector<8x16xf32>
    %28 = arith.truncf %27 : vector<8x16xf32> to vector<8x16xbf16>
    %cst_27 = arith.constant dense<0.000000e+00> : vector<8x96xf32>
    %29 = tpu.matmul %28, %25, %cst_27 {dimension_numbers = #tpu.dot_dimension_numbers<[1], [0], [0], [1], [0, 0, 1, 1], [], []>} : vector<8x16xbf16>, vector<16x96xbf16>, vector<8x96xf32> -> vector<8x96xf32>
    %30 = vector.extract_strided_slice %3 {offsets = [1, 0, 0], sizes = [1, 1, 96], strides = [1, 1, 1]} : vector<2x1x96xf32> to vector<1x1x96xf32>
    %31 = vector.shape_cast %30 : vector<1x1x96xf32> to vector<1x96xf32>
    %32 = vector.broadcast %31 : vector<1x96xf32> to vector<8x96xf32>
    %33 = arith.addf %29, %32 : vector<8x96xf32>
    %34 = vector.extract_strided_slice %33 {offsets = [0, 0], sizes = [8, 32], strides = [1, 1]} : vector<8x96xf32> to vector<8x32xf32>
    %35 = vector.shape_cast %34 : vector<8x32xf32> to vector<4x2x32xf32>
    %c0_28 = arith.constant 0 : index
    %c0_29 = arith.constant 0 : index
    %c0_30 = arith.constant 0 : index
    %36 = vector.load %arg15[%c0_28, %c0_29, %c0_30] : memref<4x2x32xf32, #tpu.memory_space<vmem>>, vector<4x2x32xf32>
    tpu.vector_store %arg15[%c0_28, %c0_29, %c0_30], %35 {strides = array<i32>} : memref<4x2x32xf32, #tpu.memory_space<vmem>>, vector<4x2x32xf32>,
    %37 = vector.extract_strided_slice %33 {offsets = [0, 32], sizes = [8, 32], strides = [1, 1]} : vector<8x96xf32> to vector<8x32xf32>
    %38 = vector.shape_cast %37 : vector<8x32xf32> to vector<4x2x32xf32>
    %c0_31 = arith.constant 0 : index
    %c0_32 = arith.constant 0 : index
    %c0_33 = arith.constant 0 : index
    %39 = vector.load %arg16[%c0_31, %c0_32, %c0_33] : memref<4x2x32xf32, #tpu.memory_space<vmem>>, vector<4x2x32xf32>
    tpu.vector_store %arg16[%c0_31, %c0_32, %c0_33], %38 {strides = array<i32>} : memref<4x2x32xf32, #tpu.memory_space<vmem>>, vector<4x2x32xf32>,
    %40 = vector.extract_strided_slice %33 {offsets = [0, 64], sizes = [8, 32], strides = [1, 1]} : vector<8x96xf32> to vector<8x32xf32>
    %41 = vector.shape_cast %40 : vector<8x32xf32> to vector<4x2x32xf32>
    %c0_34 = arith.constant 0 : index
    %c0_35 = arith.constant 0 : index
    %c0_36 = arith.constant 0 : index
    %42 = vector.load %arg17[%c0_34, %c0_35, %c0_36] : memref<4x2x32xf32, #tpu.memory_space<vmem>>, vector<4x2x32xf32>
    tpu.vector_store %arg17[%c0_34, %c0_35, %c0_36], %41 {strides = array<i32>} : memref<4x2x32xf32, #tpu.memory_space<vmem>>, vector<4x2x32xf32>,
    %c0_37 = arith.constant 0 : index
    %c0_38 = arith.constant 0 : index
    %c0_39 = arith.constant 0 : index
    %c0_40 = arith.constant 0 : index
    %43 = vector.load %arg5[%c0_37, %c0_38, %c0_39, %c0_40] : memref<2x3x32x32xbf16, #tpu.memory_space<vmem>>, vector<1x1x32x32xbf16>
    %44 = vector.shape_cast %43 : vector<1x1x32x32xbf16> to vector<32x32xbf16>
    %c0_41 = arith.constant 0 : index
    %c1_42 = arith.constant 1 : index
    %c0_43 = arith.constant 0 : index
    %c0_44 = arith.constant 0 : index
    %45 = vector.load %arg5[%c0_41, %c1_42, %c0_43, %c0_44] : memref<2x3x32x32xbf16, #tpu.memory_space<vmem>>, vector<1x1x32x32xbf16>
    %46 = vector.shape_cast %45 : vector<1x1x32x32xbf16> to vector<32x32xbf16>
    %c0_45 = arith.constant 0 : index
    %c2 = arith.constant 2 : index
    %c0_46 = arith.constant 0 : index
    %c0_47 = arith.constant 0 : index
    %47 = vector.load %arg5[%c0_45, %c2, %c0_46, %c0_47] : memref<2x3x32x32xbf16, #tpu.memory_space<vmem>>, vector<1x1x32x32xbf16>
    %48 = vector.shape_cast %47 : vector<1x1x32x32xbf16> to vector<32x32xbf16>
    %c1_48 = arith.constant 1 : index
    %c0_49 = arith.constant 0 : index
    %c0_50 = arith.constant 0 : index
    %c0_51 = arith.constant 0 : index
    %49 = vector.load %arg5[%c1_48, %c0_49, %c0_50, %c0_51] : memref<2x3x32x32xbf16, #tpu.memory_space<vmem>>, vector<1x1x32x32xbf16>
    %50 = vector.shape_cast %49 : vector<1x1x32x32xbf16> to vector<32x32xbf16>
    %c1_52 = arith.constant 1 : index
    %c1_53 = arith.constant 1 : index
    %c0_54 = arith.constant 0 : index
    %c0_55 = arith.constant 0 : index
    %51 = vector.load %arg5[%c1_52, %c1_53, %c0_54, %c0_55] : memref<2x3x32x32xbf16, #tpu.memory_space<vmem>>, vector<1x1x32x32xbf16>
    %52 = vector.shape_cast %51 : vector<1x1x32x32xbf16> to vector<32x32xbf16>
    %c1_56 = arith.constant 1 : index
    %c2_57 = arith.constant 2 : index
    %c0_58 = arith.constant 0 : index
    %c0_59 = arith.constant 0 : index
    %53 = vector.load %arg5[%c1_56, %c2_57, %c0_58, %c0_59] : memref<2x3x32x32xbf16, #tpu.memory_space<vmem>>, vector<1x1x32x32xbf16>
    %54 = vector.shape_cast %53 : vector<1x1x32x32xbf16> to vector<32x32xbf16>
    %55 = vector.extract_strided_slice %4 {offsets = [0, 0, 0, 0], sizes = [1, 1, 1, 32], strides = [1, 1, 1, 1]} : vector<2x3x1x32xf32> to vector<1x1x1x32xf32>
    %56 = vector.shape_cast %55 : vector<1x1x1x32xf32> to vector<1x32xf32>
    %57 = vector.shape_cast %56 : vector<1x32xf32> to vector<1x32xf32>
    %58 = vector.broadcast %57 : vector<1x32xf32> to vector<2x32xf32>
    %59 = vector.extract_strided_slice %4 {offsets = [0, 1, 0, 0], sizes = [1, 1, 1, 32], strides = [1, 1, 1, 1]} : vector<2x3x1x32xf32> to vector<1x1x1x32xf32>
    %60 = vector.shape_cast %59 : vector<1x1x1x32xf32> to vector<1x32xf32>
    %61 = vector.shape_cast %60 : vector<1x32xf32> to vector<1x32xf32>
    %62 = vector.broadcast %61 : vector<1x32xf32> to vector<2x32xf32>
    %63 = vector.extract_strided_slice %4 {offsets = [0, 2, 0, 0], sizes = [1, 1, 1, 32], strides = [1, 1, 1, 1]} : vector<2x3x1x32xf32> to vector<1x1x1x32xf32>
    %64 = vector.shape_cast %63 : vector<1x1x1x32xf32> to vector<1x32xf32>
    %65 = vector.shape_cast %64 : vector<1x32xf32> to vector<1x32xf32>
    %66 = vector.broadcast %65 : vector<1x32xf32> to vector<2x32xf32>
    %67 = vector.extract_strided_slice %4 {offsets = [1, 0, 0, 0], sizes = [1, 1, 1, 32], strides = [1, 1, 1, 1]} : vector<2x3x1x32xf32> to vector<1x1x1x32xf32>
    %68 = vector.shape_cast %67 : vector<1x1x1x32xf32> to vector<1x32xf32>
    %69 = vector.shape_cast %68 : vector<1x32xf32> to vector<1x32xf32>
    %70 = vector.broadcast %69 : vector<1x32xf32> to vector<2x32xf32>
    %71 = vector.extract_strided_slice %4 {offsets = [1, 1, 0, 0], sizes = [1, 1, 1, 32], strides = [1, 1, 1, 1]} : vector<2x3x1x32xf32> to vector<1x1x1x32xf32>
    %72 = vector.shape_cast %71 : vector<1x1x1x32xf32> to vector<1x32xf32>
    %73 = vector.shape_cast %72 : vector<1x32xf32> to vector<1x32xf32>
    %74 = vector.broadcast %73 : vector<1x32xf32> to vector<2x32xf32>
    %75 = vector.extract_strided_slice %4 {offsets = [1, 2, 0, 0], sizes = [1, 1, 1, 32], strides = [1, 1, 1, 1]} : vector<2x3x1x32xf32> to vector<1x1x1x32xf32>
    %76 = vector.shape_cast %75 : vector<1x1x1x32xf32> to vector<1x32xf32>
    %77 = vector.shape_cast %76 : vector<1x32xf32> to vector<1x32xf32>
    %78 = vector.broadcast %77 : vector<1x32xf32> to vector<2x32xf32>
    %c0_60 = arith.constant 0 : index
    %c0_61 = arith.constant 0 : index
    %c0_62 = arith.constant 0 : index
    %79 = vector.load %arg11[%c0_60, %c0_61, %c0_62] : memref<2x2x32xf32, #tpu.memory_space<vmem>>, vector<1x2x32xf32>
    %80 = vector.shape_cast %79 : vector<1x2x32xf32> to vector<2x32xf32>
    %c1_63 = arith.constant 1 : index
    %c0_64 = arith.constant 0 : index
    %c0_65 = arith.constant 0 : index
    %81 = vector.load %arg11[%c1_63, %c0_64, %c0_65] : memref<2x2x32xf32, #tpu.memory_space<vmem>>, vector<1x2x32xf32>
    %82 = vector.shape_cast %81 : vector<1x2x32xf32> to vector<2x32xf32>
    %c0_i32_66 = arith.constant 0 : i32
    %c4_i32 = arith.constant 4 : i32
    %83 = arith.addi %c0_i32_66, %c4_i32 : i32
    %c1_i32 = arith.constant 1 : i32
    %84:2 = scf.for %arg18 = %c0_i32_66 to %83 step %c1_i32 iter_args(%arg19 = %80, %arg20 = %82) -> (vector<2x32xf32>, vector<2x32xf32>)  : i32 {
      %c3_i32 = arith.constant 3 : i32
      %97 = arith.subi %c3_i32, %arg18 : i32
      %98 = arith.index_cast %arg18 : i32 to index
      %c0_80 = arith.constant 0 : index
      %c0_81 = arith.constant 0 : index
      %99 = vector.load %arg12[%98, %c0_80, %c0_81] : memref<4x2x32xf32, #tpu.memory_space<vmem>>, vector<1x2x32xf32>
      %100 = vector.shape_cast %99 : vector<1x2x32xf32> to vector<2x32xf32>
      %101 = arith.index_cast %arg18 : i32 to index
      %c0_82 = arith.constant 0 : index
      %c0_83 = arith.constant 0 : index
      %102 = vector.load %arg13[%101, %c0_82, %c0_83] : memref<4x2x32xf32, #tpu.memory_space<vmem>>, vector<1x2x32xf32>
      %103 = vector.shape_cast %102 : vector<1x2x32xf32> to vector<2x32xf32>
      %104 = arith.index_cast %arg18 : i32 to index
      %c0_84 = arith.constant 0 : index
      %c0_85 = arith.constant 0 : index
      %105 = vector.load %arg14[%104, %c0_84, %c0_85] : memref<4x2x32xf32, #tpu.memory_space<vmem>>, vector<1x2x32xf32>
      %106 = vector.shape_cast %105 : vector<1x2x32xf32> to vector<2x32xf32>
      %107 = arith.truncf %arg19 : vector<2x32xf32> to vector<2x32xbf16>
      %cst_86 = arith.constant dense<0.000000e+00> : vector<2x32xf32>
      %108 = tpu.matmul %107, %44, %cst_86 {dimension_numbers = #tpu.dot_dimension_numbers<[1], [0], [0], [1], [0, 0, 1, 1], [], []>} : vector<2x32xbf16>, vector<32x32xbf16>, vector<2x32xf32> -> vector<2x32xf32>
      %109 = arith.addf %108, %58 : vector<2x32xf32>
      %cst_87 = arith.constant dense<0.000000e+00> : vector<2x32xf32>
      %110 = tpu.matmul %107, %46, %cst_87 {dimension_numbers = #tpu.dot_dimension_numbers<[1], [0], [0], [1], [0, 0, 1, 1], [], []>} : vector<2x32xbf16>, vector<32x32xbf16>, vector<2x32xf32> -> vector<2x32xf32>
      %111 = arith.addf %110, %62 : vector<2x32xf32>
      %cst_88 = arith.constant dense<0.000000e+00> : vector<2x32xf32>
      %112 = tpu.matmul %107, %48, %cst_88 {dimension_numbers = #tpu.dot_dimension_numbers<[1], [0], [0], [1], [0, 0, 1, 1], [], []>} : vector<2x32xbf16>, vector<32x32xbf16>, vector<2x32xf32> -> vector<2x32xf32>
      %113 = arith.addf %112, %66 : vector<2x32xf32>
      %114 = arith.addf %100, %109 : vector<2x32xf32>
      %115 = arith.negf %114 : vector<2x32xf32>
      %116 = math.exp %115 : vector<2x32xf32>
      %cst_89 = arith.constant 1.000000e+00 : f32
      %117 = vector.broadcast %cst_89 : f32 to vector<2x32xf32>
      %118 = arith.addf %117, %116 : vector<2x32xf32>
      %119 = arith.divf %117, %118 : vector<2x32xf32>
      %120 = arith.addf %103, %111 : vector<2x32xf32>
      %121 = arith.negf %120 : vector<2x32xf32>
      %122 = math.exp %121 : vector<2x32xf32>
      %cst_90 = arith.constant 1.000000e+00 : f32
      %123 = vector.broadcast %cst_90 : f32 to vector<2x32xf32>
      %124 = arith.addf %123, %122 : vector<2x32xf32>
      %125 = arith.divf %123, %124 : vector<2x32xf32>
      %126 = arith.mulf %119, %113 : vector<2x32xf32>
      %127 = arith.addf %106, %126 : vector<2x32xf32>
      %128 = math.tanh %127 : vector<2x32xf32>
      %cst_91 = arith.constant 1.000000e+00 : f32
      %129 = vector.broadcast %cst_91 : f32 to vector<2x32xf32>
      %130 = arith.subf %129, %125 : vector<2x32xf32>
      %131 = arith.mulf %130, %128 : vector<2x32xf32>
      %132 = arith.mulf %125, %arg19 : vector<2x32xf32>
      %133 = arith.addf %131, %132 : vector<2x32xf32>
      %134 = arith.index_cast %97 : i32 to index
      %c0_92 = arith.constant 0 : index
      %c0_93 = arith.constant 0 : index
      %135 = vector.load %arg15[%134, %c0_92, %c0_93] : memref<4x2x32xf32, #tpu.memory_space<vmem>>, vector<1x2x32xf32>
      %136 = vector.shape_cast %135 : vector<1x2x32xf32> to vector<2x32xf32>
      %137 = arith.index_cast %97 : i32 to index
      %c0_94 = arith.constant 0 : index
      %c0_95 = arith.constant 0 : index
      %138 = vector.load %arg16[%137, %c0_94, %c0_95] : memref<4x2x32xf32, #tpu.memory_space<vmem>>, vector<1x2x32xf32>
      %139 = vector.shape_cast %138 : vector<1x2x32xf32> to vector<2x32xf32>
      %140 = arith.index_cast %97 : i32 to index
      %c0_96 = arith.constant 0 : index
      %c0_97 = arith.constant 0 : index
      %141 = vector.load %arg17[%140, %c0_96, %c0_97] : memref<4x2x32xf32, #tpu.memory_space<vmem>>, vector<1x2x32xf32>
      %142 = vector.shape_cast %141 : vector<1x2x32xf32> to vector<2x32xf32>
      %143 = arith.truncf %arg20 : vector<2x32xf32> to vector<2x32xbf16>
      %cst_98 = arith.constant dense<0.000000e+00> : vector<2x32xf32>
      %144 = tpu.matmul %143, %50, %cst_98 {dimension_numbers = #tpu.dot_dimension_numbers<[1], [0], [0], [1], [0, 0, 1, 1], [], []>} : vector<2x32xbf16>, vector<32x32xbf16>, vector<2x32xf32> -> vector<2x32xf32>
      %145 = arith.addf %144, %70 : vector<2x32xf32>
      %cst_99 = arith.constant dense<0.000000e+00> : vector<2x32xf32>
      %146 = tpu.matmul %143, %52, %cst_99 {dimension_numbers = #tpu.dot_dimension_numbers<[1], [0], [0], [1], [0, 0, 1, 1], [], []>} : vector<2x32xbf16>, vector<32x32xbf16>, vector<2x32xf32> -> vector<2x32xf32>
      %147 = arith.addf %146, %74 : vector<2x32xf32>
      %cst_100 = arith.constant dense<0.000000e+00> : vector<2x32xf32>
      %148 = tpu.matmul %143, %54, %cst_100 {dimension_numbers = #tpu.dot_dimension_numbers<[1], [0], [0], [1], [0, 0, 1, 1], [], []>} : vector<2x32xbf16>, vector<32x32xbf16>, vector<2x32xf32> -> vector<2x32xf32>
      %149 = arith.addf %148, %78 : vector<2x32xf32>
      %150 = arith.addf %136, %145 : vector<2x32xf32>
      %151 = arith.negf %150 : vector<2x32xf32>
      %152 = math.exp %151 : vector<2x32xf32>
      %cst_101 = arith.constant 1.000000e+00 : f32
      %153 = vector.broadcast %cst_101 : f32 to vector<2x32xf32>
      %154 = arith.addf %153, %152 : vector<2x32xf32>
      %155 = arith.divf %153, %154 : vector<2x32xf32>
      %156 = arith.addf %139, %147 : vector<2x32xf32>
      %157 = arith.negf %156 : vector<2x32xf32>
      %158 = math.exp %157 : vector<2x32xf32>
      %cst_102 = arith.constant 1.000000e+00 : f32
      %159 = vector.broadcast %cst_102 : f32 to vector<2x32xf32>
      %160 = arith.addf %159, %158 : vector<2x32xf32>
      %161 = arith.divf %159, %160 : vector<2x32xf32>
      %162 = arith.mulf %155, %149 : vector<2x32xf32>
      %163 = arith.addf %142, %162 : vector<2x32xf32>
      %164 = math.tanh %163 : vector<2x32xf32>
      %cst_103 = arith.constant 1.000000e+00 : f32
      %165 = vector.broadcast %cst_103 : f32 to vector<2x32xf32>
      %166 = arith.subf %165, %161 : vector<2x32xf32>
      %167 = arith.mulf %166, %164 : vector<2x32xf32>
      %168 = arith.mulf %161, %arg20 : vector<2x32xf32>
      %169 = arith.addf %167, %168 : vector<2x32xf32>
      %170 = arith.truncf %133 : vector<2x32xf32> to vector<2x32xbf16>
      %171 = arith.index_cast %arg18 : i32 to index
      %c0_104 = arith.constant 0 : index
      %c0_105 = arith.constant 0 : index
      %172 = vector.load %arg8[%171, %c0_104, %c0_105] : memref<4x2x32xbf16, #tpu.memory_space<vmem>>, vector<1x2x32xbf16>
      %173 = vector.shape_cast %172 : vector<1x2x32xbf16> to vector<2x32xbf16>
      %174 = vector.shape_cast %170 : vector<2x32xbf16> to vector<1x2x32xbf16>
      tpu.vector_store %arg8[%171, %c0_104, %c0_105], %174 {strides = array<i32>} : memref<4x2x32xbf16, #tpu.memory_space<vmem>>, vector<1x2x32xbf16>,
      %175 = arith.truncf %169 : vector<2x32xf32> to vector<2x32xbf16>
      %176 = arith.index_cast %97 : i32 to index
      %c0_106 = arith.constant 0 : index
      %c0_107 = arith.constant 0 : index
      %177 = vector.load %arg9[%176, %c0_106, %c0_107] : memref<4x2x32xbf16, #tpu.memory_space<vmem>>, vector<1x2x32xbf16>
      %178 = vector.shape_cast %177 : vector<1x2x32xbf16> to vector<2x32xbf16>
      %179 = vector.shape_cast %175 : vector<2x32xbf16> to vector<1x2x32xbf16>
      tpu.vector_store %arg9[%176, %c0_106, %c0_107], %179 {strides = array<i32>} : memref<4x2x32xbf16, #tpu.memory_space<vmem>>, vector<1x2x32xbf16>,
      scf.yield %133, %169 : vector<2x32xf32>, vector<2x32xf32>
    }
    %c4_i32_67 = arith.constant 4 : i32
    %c0_68 = arith.constant 0 : index
    %c0_69 = arith.constant 0 : index
    %c0_70 = arith.constant 0 : index
    %85 = vector.load %arg11[%c0_68, %c0_69, %c0_70] : memref<2x2x32xf32, #tpu.memory_space<vmem>>, vector<1x2x32xf32>
    %86 = vector.shape_cast %85 : vector<1x2x32xf32> to vector<2x32xf32>
    %87 = vector.shape_cast %84#0 : vector<2x32xf32> to vector<1x2x32xf32>
    tpu.vector_store %arg11[%c0_68, %c0_69, %c0_70], %87 {strides = array<i32>} : memref<2x2x32xf32, #tpu.memory_space<vmem>>, vector<1x2x32xf32>,
    %c1_71 = arith.constant 1 : index
    %c0_72 = arith.constant 0 : index
    %c0_73 = arith.constant 0 : index
    %88 = vector.load %arg11[%c1_71, %c0_72, %c0_73] : memref<2x2x32xf32, #tpu.memory_space<vmem>>, vector<1x2x32xf32>
    %89 = vector.shape_cast %88 : vector<1x2x32xf32> to vector<2x32xf32>
    %90 = vector.shape_cast %84#1 : vector<2x32xf32> to vector<1x2x32xf32>
    tpu.vector_store %arg11[%c1_71, %c0_72, %c0_73], %90 {strides = array<i32>} : memref<2x2x32xf32, #tpu.memory_space<vmem>>, vector<1x2x32xf32>,
    %c0_74 = arith.constant 0 : index
    %c0_75 = arith.constant 0 : index
    %c0_76 = arith.constant 0 : index
    %91 = vector.load %arg10[%c0_74, %c0_75, %c0_76] : memref<2x2x32xf32, #tpu.memory_space<vmem>>, vector<1x2x32xf32>
    %92 = vector.shape_cast %91 : vector<1x2x32xf32> to vector<2x32xf32>
    %93 = vector.shape_cast %84#0 : vector<2x32xf32> to vector<1x2x32xf32>
    tpu.vector_store %arg10[%c0_74, %c0_75, %c0_76], %93 {strides = array<i32>} : memref<2x2x32xf32, #tpu.memory_space<vmem>>, vector<1x2x32xf32>,
    %c1_77 = arith.constant 1 : index
    %c0_78 = arith.constant 0 : index
    %c0_79 = arith.constant 0 : index
    %94 = vector.load %arg10[%c1_77, %c0_78, %c0_79] : memref<2x2x32xf32, #tpu.memory_space<vmem>>, vector<1x2x32xf32>
    %95 = vector.shape_cast %94 : vector<1x2x32xf32> to vector<2x32xf32>
    %96 = vector.shape_cast %84#1 : vector<2x32xf32> to vector<1x2x32xf32>
    tpu.vector_store %arg10[%c1_77, %c0_78, %c0_79], %96 {strides = array<i32>} : memref<2x2x32xf32, #tpu.memory_space<vmem>>, vector<1x2x32xf32>,
    return
  }
  func.func @transform_0(%arg0: i32) -> (i32, i32, i32) {
    %c0_i32 = arith.constant 0 : i32
    %c0_i32_0 = arith.constant 0 : i32
    %c0_i32_1 = arith.constant 0 : i32
    return %arg0, %c0_i32, %c0_i32_0 : i32, i32, i32
  }
  func.func @transform_1(%arg0: i32) -> (i32, i32, i32) {
    %c1_i32 = arith.constant 1 : i32
    %0 = arith.subi %c1_i32, %arg0 : i32
    %c0_i32 = arith.constant 0 : i32
    %c0_i32_0 = arith.constant 0 : i32
    %c0_i32_1 = arith.constant 0 : i32
    return %0, %c0_i32, %c0_i32_0 : i32, i32, i32
  }
  func.func @transform_2(%arg0: i32) -> (i32, i32, i32) {
    %c0_i32 = arith.constant 0 : i32
    %c0_i32_0 = arith.constant 0 : i32
    %c0_i32_1 = arith.constant 0 : i32
    %c0_i32_2 = arith.constant 0 : i32
    return %c0_i32, %c0_i32_0, %c0_i32_1 : i32, i32, i32
  }
  func.func @transform_3(%arg0: i32) -> (i32, i32, i32) {
    %c0_i32 = arith.constant 0 : i32
    %c0_i32_0 = arith.constant 0 : i32
    %c0_i32_1 = arith.constant 0 : i32
    %c0_i32_2 = arith.constant 0 : i32
    return %c0_i32, %c0_i32_0, %c0_i32_1 : i32, i32, i32
  }
  func.func @transform_4(%arg0: i32) -> (i32, i32, i32, i32) {
    %c0_i32 = arith.constant 0 : i32
    %c0_i32_0 = arith.constant 0 : i32
    %c0_i32_1 = arith.constant 0 : i32
    %c0_i32_2 = arith.constant 0 : i32
    %c0_i32_3 = arith.constant 0 : i32
    return %c0_i32, %c0_i32_0, %c0_i32_1, %c0_i32_2 : i32, i32, i32, i32
  }
  func.func @transform_5(%arg0: i32) -> (i32, i32, i32) {
    %c0_i32 = arith.constant 0 : i32
    %c0_i32_0 = arith.constant 0 : i32
    %c0_i32_1 = arith.constant 0 : i32
    %c0_i32_2 = arith.constant 0 : i32
    return %c0_i32, %c0_i32_0, %c0_i32_1 : i32, i32, i32
  }
  func.func @transform_6(%arg0: i32) -> (i32, i32, i32, i32) {
    %c0_i32 = arith.constant 0 : i32
    %c0_i32_0 = arith.constant 0 : i32
    %c0_i32_1 = arith.constant 0 : i32
    %c0_i32_2 = arith.constant 0 : i32
    %c0_i32_3 = arith.constant 0 : i32
    return %c0_i32, %c0_i32_0, %c0_i32_1, %c0_i32_2 : i32, i32, i32, i32
  }
  func.func @transform_7(%arg0: i32) -> (i32, i32, i32) {
    %c0_i32 = arith.constant 0 : i32
    %c0_i32_0 = arith.constant 0 : i32
    %c0_i32_1 = arith.constant 0 : i32
    return %arg0, %c0_i32, %c0_i32_0 : i32, i32, i32
  }
  func.func @transform_8(%arg0: i32) -> (i32, i32, i32) {
    %c1_i32 = arith.constant 1 : i32
    %0 = arith.subi %c1_i32, %arg0 : i32
    %c0_i32 = arith.constant 0 : i32
    %c0_i32_0 = arith.constant 0 : i32
    %c0_i32_1 = arith.constant 0 : i32
    return %0, %c0_i32, %c0_i32_0 : i32, i32, i32
  }
  func.func @transform_9(%arg0: i32) -> (i32, i32, i32) {
    %c0_i32 = arith.constant 0 : i32
    %c0_i32_0 = arith.constant 0 : i32
    %c0_i32_1 = arith.constant 0 : i32
    %c0_i32_2 = arith.constant 0 : i32
    return %c0_i32, %c0_i32_0, %c0_i32_1 : i32, i32, i32
  }
}

</mosaic_0001>

<llo_original>
// kernel: tpu_custom_call.1
$region0: #{tpu_custom_call.1}
  #allocation0 [shape = 'u32[]', space=smem, size = 0x4, offset = 0x4, fixed_abs, tag = 'smem constant byte address 0x4 - core index']
  #allocation1 [shape = 'u32[72,128]{1,0:T(1,128)}', space=vmem, size = 0x9000, scoped, tag = 'internal scratch']
  #allocation2 [shape = 'f32[2,2,32]{2,1,0:T(2,128)}', space=vmem, size = 0x800, scoped, tag = 'scratch operand']
  #allocation3 [shape = 'f32[4,2,32]{2,1,0:T(2,128)}', space=vmem, size = 0x1000, scoped, tag = 'scratch operand']
  #allocation4 [shape = 'f32[4,2,32]{2,1,0:T(2,128)}', space=vmem, size = 0x1000, scoped, tag = 'scratch operand']
  #allocation5 [shape = 'f32[4,2,32]{2,1,0:T(2,128)}', space=vmem, size = 0x1000, scoped, tag = 'scratch operand']
  #allocation6 [shape = 'f32[4,2,32]{2,1,0:T(2,128)}', space=vmem, size = 0x1000, scoped, tag = 'scratch operand']
  #allocation7 [shape = 'f32[4,2,32]{2,1,0:T(2,128)}', space=vmem, size = 0x1000, scoped, tag = 'scratch operand']
  #allocation8 [shape = 'f32[4,2,32]{2,1,0:T(2,128)}', space=vmem, size = 0x1000, scoped, tag = 'scratch operand']
  %s0 = inlined_call_operand.hbm [shape: f32[8,2,16], index: 0, kind: input, shape index: {}]
  %s1 = inlined_call_operand.hbm [shape: f32[8,2,16], index: 1, kind: input, shape index: {}]
  %s2 = inlined_call_operand.hbm [shape: f32[2,2,32], index: 2, kind: input, shape index: {}]
  %s3 = inlined_call_operand.hbm [shape: bf16[2,16,96], index: 3, kind: input, shape index: {}]
  %s4 = inlined_call_operand.hbm [shape: bf16[2,3,32,32], index: 4, kind: input, shape index: {}]
  %s5 = inlined_call_operand.vmem [shape: f32[2,1,96], index: 5, kind: input, shape index: {}]
  %s6 = inlined_call_operand.hbm [shape: f32[2,3,1,32], index: 6, kind: input, shape index: {}]
  %s7 = inlined_call_operand.hbm [shape: bf16[8,2,32], index: 7, kind: output, shape index: {0}]
  %s8 = inlined_call_operand.hbm [shape: bf16[8,2,32], index: 8, kind: output, shape index: {1}]
  %s9 = inlined_call_operand.hbm [shape: f32[2,2,32], index: 9, kind: output, shape index: {2}]
  %10 = xla_tuple %s7, %s8, %s9
  %s11 = sld [smem:[#allocation0]]
  $region112: #{tpu_custom_call.1} parent=0
    _
  %s13 = ssub.s32 1, %s11
  %s14 = scalar_select 0, %s13, %s11
  $region1: #{tpu_custom_call.1} parent=0
    #allocation9 [shape = 'u8[8192]{0}', space=vmem, size = 0x2000, scoped, tag = 'input window, operand 0']
    #allocation10 [shape = 's32[2]{0}', space=sflag, size = 0x8, scoped, tag = 'scoped memory for tpu_custom_call.1']
    #allocation11 [shape = 's32[2]{0}', space=sflag, size = 0x8, scoped, tag = 'scoped memory for tpu_custom_call.1']
    #allocation12 [shape = 'u8[8192]{0}', space=vmem, size = 0x2000, scoped, tag = 'input window, operand 1']
    #allocation13 [shape = 's32[2]{0}', space=sflag, size = 0x8, scoped, tag = 'scoped memory for tpu_custom_call.1']
    #allocation14 [shape = 'u8[2048]{0}', space=vmem, size = 0x800, scoped, tag = 'input window, operand 2, single buffered']
    #allocation15 [shape = 'u8[8192]{0}', space=vmem, size = 0x2000, scoped, tag = 'input window, operand 3, single buffered']
    #allocation16 [shape = 's32[1]{0}', space=sflag, size = 0x4, scoped, tag = 'scoped memory for tpu_custom_call.1']
    #allocation17 [shape = 'u8[49152]{0}', space=vmem, size = 0xc000, scoped, tag = 'input window, operand 4, single buffered']
    #allocation18 [shape = 'u8[3072]{0}', space=vmem, size = 0xc00, scoped, tag = 'input window, operand 6, single buffered']
    #allocation19 [shape = 's32[1]{0}', space=sflag, size = 0x4, scoped, tag = 'scoped memory for tpu_custom_call.1']
    #allocation20 [shape = 'u8[4096]{0}', space=vmem, size = 0x1000, scoped, tag = 'output window, operand 0']
    #allocation21 [shape = 'u8[4096]{0}', space=vmem, size = 0x1000, scoped, tag = 'output window, operand 1']
    #allocation22 [shape = 's32[2]{0}', space=sflag, size = 0x8, scoped, tag = 'scoped memory for tpu_custom_call.1']
    #allocation23 [shape = 'u8[2048]{0}', space=vmem, size = 0x800, scoped, tag = 'output window, operand 2, single buffered']
    %15 = vsyncpa [#allocation10], 0
    %s16 = scalar_lea.sflag [#allocation10], 1
    %17 = vsyncpa %s16, 0
    %18 = vsyncpa [#allocation13], 0
    %s19 = scalar_lea.sflag [#allocation13], 1
    %20 = vsyncpa %s19, 0
    %21 = vsyncpa [#allocation16], 0
    %22 = vsyncpa [#allocation19], 0
    %23 = vsyncpa [#allocation11], 0
    %s24 = scalar_lea.sflag [#allocation11], 1
    %25 = vsyncpa %s24, 0
    %26 = vsyncpa [#allocation22], 0
    %s27 = scalar_lea.sflag [#allocation22], 1
    %28 = vsyncpa %s27, 0
    loop: start=0, step=1, limit=4
    $region2: #{tpu_custom_call.1} parent=1 // loop_pre_header
      _
    $region3: #{tpu_custom_call.1} parent=1 // loop_header
      %s30 = sphi 0, %s34
      %p31 = scmp.ge.s32.totalorder %s30, 4
      %s40 = sphi 0, %s42
      %s43 = sphi 0, %s40
      %s44 = sphi 0, %s43
      %s60 = sphi 0, %s44
      %s68 = sphi 0, %s70
      %s71 = sphi 0, %s68
      %s72 = sphi 0, %s71
      %s88 = sphi 0, %s72
      %s92 = sphi 0, %s92
      %s94 = sphi 0, %s92
      %s95 = sphi 0, %s94
      %s109 = sphi 0, %s95
      %s113 = sphi 0, %s113
      %s115 = sphi 0, %s113
      %s116 = sphi 0, %s115
      %s130 = sphi 0, %s116
      %s134 = sphi 0, %s134
      %s136 = sphi 0, %s134
      %s137 = sphi 0, %s136
      %s151 = sphi 0, %s137
      %s155 = sphi 0, %s155
      %s157 = sphi 0, %s155
      %s158 = sphi 0, %s157
      %s172 = sphi 0, %s158
      %s176 = sphi 0, %s176
      %s178 = sphi 0, %s176
      %s179 = sphi 0, %s178
      %s193 = sphi 0, %s179
      %s199 = sphi 0, %s201
      %s202 = sphi 0, %s199
      %s203 = sphi 0, %s202
      %s219 = sphi 0, %s203
      %s227 = sphi 0, %s229
      %s230 = sphi 0, %s227
      %s231 = sphi 0, %s230
      %s247 = sphi 0, %s231
      %s251 = sphi 0, %s251
      %s253 = sphi 0, %s251
      %s254 = sphi 0, %s253
      %s268 = sphi 0, %s254
    $region4: #{tpu_custom_call.1} parent=1 // loop_header_branch
      %33 = sbr.rel (%p31) target = $region8
    $region5: #{tpu_custom_call.1} parent=1 // loop_body
      %s35 = ssub.s32 %s30, 1
      %s36 = ssub.s32 %s30, 2
      %s37 = sadd.s32 %s30, 1
      %s38 = ssub.s32 %s30, %s37
      %p39 = scmp.eq.s32.totalorder %s38, 0
      %s41 = sadd.s32 %s40, 1
      %s42 = scalar_select %p39, %s40, %s41
      %p45 = pneg %p39
      %p46 = scmp.eq.s32.totalorder %s30, 1
      %p47 = por %p45, %p46
      %p48 = scmp.ne.s32.totalorder %s40, %s43
      %p49 = scmp.eq.s32.totalorder %s30, 0
      %p50 = por %p48, %p49
      %p51 = scmp.ne.s32.totalorder %s40, %s43
      %p52 = scmp.eq.s32.totalorder %s35, 1
      %p53 = por %p51, %p52
      %p54 = scmp.ne.s32.totalorder %s43, %s44
      %p55 = scmp.eq.s32.totalorder %s35, 0
      %p56 = por %p54, %p55
      %p57 = scmp.ne.s32.totalorder %s43, %s44
      %p58 = scmp.eq.s32.totalorder %s36, 1
      %p59 = por %p57, %p58
      %p61 = scmp.ne.s32.totalorder %s44, %s60
      %p62 = scmp.eq.s32.totalorder %s36, 0
      %p63 = por %p61, %p62
      %s64 = ssub.s32 1, %s30
      %s65 = ssub.s32 1, %s37
      %s66 = ssub.s32 %s64, %s65
      %p67 = scmp.eq.s32.totalorder %s66, 0
      %s69 = sadd.s32 %s68, 1
      %s70 = scalar_select %p67, %s68, %s69
      %p73 = pneg %p67
      %p74 = scmp.eq.s32.totalorder %s30, 1
      %p75 = por %p73, %p74
      %p76 = scmp.ne.s32.totalorder %s68, %s71
      %p77 = scmp.eq.s32.totalorder %s30, 0
      %p78 = por %p76, %p77
      %p79 = scmp.ne.s32.totalorder %s68, %s71
      %p80 = scmp.eq.s32.totalorder %s35, 1
      %p81 = por %p79, %p80
      %p82 = scmp.ne.s32.totalorder %s71, %s72
      %p83 = scmp.eq.s32.totalorder %s35, 0
      %p84 = por %p82, %p83
      %p85 = scmp.ne.s32.totalorder %s71, %s72
      %p86 = scmp.eq.s32.totalorder %s36, 1
      %p87 = por %p85, %p86
      %p89 = scmp.ne.s32.totalorder %s72, %s88
      %p90 = scmp.eq.s32.totalorder %s36, 0
      %p91 = por %p89, %p90
      %s93 = sadd.s32 %s92, 1
      %p96 = scmp.eq.s32.totalorder %s30, 1
      %p97 = scmp.ne.s32.totalorder %s92, %s94
      %p98 = scmp.eq.s32.totalorder %s30, 0
      %p99 = por %p97, %p98
      %p100 = scmp.ne.s32.totalorder %s92, %s94
      %p101 = scmp.eq.s32.totalorder %s35, 1
      %p102 = por %p100, %p101
      %p103 = scmp.ne.s32.totalorder %s94, %s95
      %p104 = scmp.eq.s32.totalorder %s35, 0
      %p105 = por %p103, %p104
      %p106 = scmp.ne.s32.totalorder %s94, %s95
      %p107 = scmp.eq.s32.totalorder %s36, 1
      %p108 = por %p106, %p107
      %p110 = scmp.ne.s32.totalorder %s95, %s109
      %p111 = scmp.eq.s32.totalorder %s36, 0
      %p112 = por %p110, %p111
      %s114 = sadd.s32 %s113, 1
      %p117 = scmp.eq.s32.totalorder %s30, 1
      %p118 = scmp.ne.s32.totalorder %s113, %s115
      %p119 = scmp.eq.s32.totalorder %s30, 0
      %p120 = por %p118, %p119
      %p121 = scmp.ne.s32.totalorder %s113, %s115
      %p122 = scmp.eq.s32.totalorder %s35, 1
      %p123 = por %p121, %p122
      %p124 = scmp.ne.s32.totalorder %s115, %s116
      %p125 = scmp.eq.s32.totalorder %s35, 0
      %p126 = por %p124, %p125
      %p127 = scmp.ne.s32.totalorder %s115, %s116
      %p128 = scmp.eq.s32.totalorder %s36, 1
      %p129 = por %p127, %p128
      %p131 = scmp.ne.s32.totalorder %s116, %s130
      %p132 = scmp.eq.s32.totalorder %s36, 0
      %p133 = por %p131, %p132
      %s135 = sadd.s32 %s134, 1
      %p138 = scmp.eq.s32.totalorder %s30, 1
      %p139 = scmp.ne.s32.totalorder %s134, %s136
      %p140 = scmp.eq.s32.totalorder %s30, 0
      %p141 = por %p139, %p140
      %p142 = scmp.ne.s32.totalorder %s134, %s136
      %p143 = scmp.eq.s32.totalorder %s35, 1
      %p144 = por %p142, %p143
      %p145 = scmp.ne.s32.totalorder %s136, %s137
      %p146 = scmp.eq.s32.totalorder %s35, 0
      %p147 = por %p145, %p146
      %p148 = scmp.ne.s32.totalorder %s136, %s137
      %p149 = scmp.eq.s32.totalorder %s36, 1
      %p150 = por %p148, %p149
      %p152 = scmp.ne.s32.totalorder %s137, %s151
      %p153 = scmp.eq.s32.totalorder %s36, 0
      %p154 = por %p152, %p153
      %s156 = sadd.s32 %s155, 1
      %p159 = scmp.eq.s32.totalorder %s30, 1
      %p160 = scmp.ne.s32.totalorder %s155, %s157
      %p161 = scmp.eq.s32.totalorder %s30, 0
      %p162 = por %p160, %p161
      %p163 = scmp.ne.s32.totalorder %s155, %s157
      %p164 = scmp.eq.s32.totalorder %s35, 1
      %p165 = por %p163, %p164
      %p166 = scmp.ne.s32.totalorder %s157, %s158
      %p167 = scmp.eq.s32.totalorder %s35, 0
      %p168 = por %p166, %p167
      %p169 = scmp.ne.s32.totalorder %s157, %s158
      %p170 = scmp.eq.s32.totalorder %s36, 1
      %p171 = por %p169, %p170
      %p173 = scmp.ne.s32.totalorder %s158, %s172
      %p174 = scmp.eq.s32.totalorder %s36, 0
      %p175 = por %p173, %p174
      %s177 = sadd.s32 %s176, 1
      %p180 = scmp.eq.s32.totalorder %s30, 1
      %p181 = scmp.ne.s32.totalorder %s176, %s178
      %p182 = scmp.eq.s32.totalorder %s30, 0
      %p183 = por %p181, %p182
      %p184 = scmp.ne.s32.totalorder %s176, %s178
      %p185 = scmp.eq.s32.totalorder %s35, 1
      %p186 = por %p184, %p185
      %p187 = scmp.ne.s32.totalorder %s178, %s179
      %p188 = scmp.eq.s32.totalorder %s35, 0
      %p189 = por %p187, %p188
      %p190 = scmp.ne.s32.totalorder %s178, %s179
      %p191 = scmp.eq.s32.totalorder %s36, 1
      %p192 = por %p190, %p191
      %p194 = scmp.ne.s32.totalorder %s179, %s193
      %p195 = scmp.eq.s32.totalorder %s36, 0
      %p196 = por %p194, %p195
      %s197 = ssub.s32 %s30, %s37
      %p198 = scmp.eq.s32.totalorder %s197, 0
      %s200 = sadd.s32 %s199, 1
      %s201 = scalar_select %p198, %s199, %s200
      %p204 = pneg %p198
      %p205 = scmp.eq.s32.totalorder %s30, 1
      %p206 = por %p204, %p205
      %p207 = scmp.ne.s32.totalorder %s199, %s202
      %p208 = scmp.eq.s32.totalorder %s30, 0
      %p209 = por %p207, %p208
      %p210 = scmp.ne.s32.totalorder %s199, %s202
      %p211 = scmp.eq.s32.totalorder %s35, 1
      %p212 = por %p210, %p211
      %p213 = scmp.ne.s32.totalorder %s202, %s203
      %p214 = scmp.eq.s32.totalorder %s35, 0
      %p215 = por %p213, %p214
      %p216 = scmp.ne.s32.totalorder %s202, %s203
      %p217 = scmp.eq.s32.totalorder %s36, 1
      %p218 = por %p216, %p217
      %p220 = scmp.ne.s32.totalorder %s203, %s219
      %p221 = scmp.eq.s32.totalorder %s36, 0
      %p222 = por %p220, %p221
      %s223 = ssub.s32 1, %s30
      %s224 = ssub.s32 1, %s37
      %s225 = ssub.s32 %s223, %s224
      %p226 = scmp.eq.s32.totalorder %s225, 0
      %s228 = sadd.s32 %s227, 1
      %s229 = scalar_select %p226, %s227, %s228
      %p232 = pneg %p226
      %p233 = scmp.eq.s32.totalorder %s30, 1
      %p234 = por %p232, %p233
      %p235 = scmp.ne.s32.totalorder %s227, %s230
      %p236 = scmp.eq.s32.totalorder %s30, 0
      %p237 = por %p235, %p236
      %p238 = scmp.ne.s32.totalorder %s227, %s230
      %p239 = scmp.eq.s32.totalorder %s35, 1
      %p240 = por %p238, %p239
      %p241 = scmp.ne.s32.totalorder %s230, %s231
      %p242 = scmp.eq.s32.totalorder %s35, 0
      %p243 = por %p241, %p242
      %p244 = scmp.ne.s32.totalorder %s230, %s231
      %p245 = scmp.eq.s32.totalorder %s36, 1
      %p246 = por %p244, %p245
      %p248 = scmp.ne.s32.totalorder %s231, %s247
      %p249 = scmp.eq.s32.totalorder %s36, 0
      %p250 = por %p248, %p249
      %s252 = sadd.s32 %s251, 1
      %p255 = scmp.eq.s32.totalorder %s30, 1
      %p256 = scmp.ne.s32.totalorder %s251, %s253
      %p257 = scmp.eq.s32.totalorder %s30, 0
      %p258 = por %p256, %p257
      %p259 = scmp.ne.s32.totalorder %s251, %s253
      %p260 = scmp.eq.s32.totalorder %s35, 1
      %p261 = por %p259, %p260
      %p262 = scmp.ne.s32.totalorder %s253, %s254
      %p263 = scmp.eq.s32.totalorder %s35, 0
      %p264 = por %p262, %p263
      %p265 = scmp.ne.s32.totalorder %s253, %s254
      %p266 = scmp.eq.s32.totalorder %s36, 1
      %p267 = por %p265, %p266
      %p269 = scmp.ne.s32.totalorder %s254, %s268
      %p270 = scmp.eq.s32.totalorder %s36, 0
      %p271 = por %p269, %p270
      %p272 = scmp.le.s32.totalorder 1, %s30
      %p273 = scmp.lt.s32.totalorder %s30, 3
      %p274 = pnand %p272, %p273
      %p275 = pneg %p274
      // Predicated region
      $region9: #{tpu_custom_call.1} parent=5 // pred_check
        _
      $region10: #{tpu_custom_call.1} parent=5 // pred_check_branch
        %277 = sbr.rel (%p274) target = $region12
      $region11: #{tpu_custom_call.1} parent=5 // pred_region
        %s278 = ssub.s32 %s30, 1
        // Predicated region
        $region13: #{tpu_custom_call.1} parent=11 // pred_check
          %p279 = pneg %p105
        $region14: #{tpu_custom_call.1} parent=11 // pred_check_branch
          %281 = sbr.rel (%p279) target = $region16
        $region15: #{tpu_custom_call.1} parent=11 // pred_region
          %283 = vsyncadd [#allocation13], 0
          %s284 = sshll.u32 %s2, 4
          %s285 = int_to_ptr.hbm [resolvable:$true] %s284
          %s286 = sshll.u32 [#allocation14], 4
          %s287 = int_to_ptr.vmem [resolvable:$true] %s286
          %292 = dma.hbm_to_vmem [thread:$0]  %s285, 64, %s287, [#allocation13], 32, 32, 2
        $region16: #{tpu_custom_call.1} parent=11 // pred_fallthru
          _
        // Predicated region
        $region17: #{tpu_custom_call.1} parent=11 // pred_check
          %p293 = pneg %p126
        $region18: #{tpu_custom_call.1} parent=11 // pred_check_branch
          %295 = sbr.rel (%p293) target = $region20
        $region19: #{tpu_custom_call.1} parent=11 // pred_region
          %297 = vsyncadd [#allocation16], 0
          %s298 = sshll.u32 %s3, 4
          %s299 = int_to_ptr.hbm [resolvable:$true] %s298
          %s300 = sshll.u32 [#allocation15], 4
          %s301 = int_to_ptr.vmem [resolvable:$true] %s300
          %306 = dma.hbm_to_vmem [thread:$0]  %s299, 256, %s301, [#allocation16], 64, 64, 4
        $region20: #{tpu_custom_call.1} parent=11 // pred_fallthru
          _
        // Predicated region
        $region21: #{tpu_custom_call.1} parent=11 // pred_check
          %p307 = pneg %p147
        $region22: #{tpu_custom_call.1} parent=11 // pred_check_branch
          %309 = sbr.rel (%p307) target = $region24
        $region23: #{tpu_custom_call.1} parent=11 // pred_region
          %311 = vsyncadd [#allocation16], 0
          %s312 = sshll.u32 %s4, 4
          %s313 = int_to_ptr.hbm [resolvable:$true] %s312
          %s314 = sshll.u32 [#allocation17], 4
          %s315 = int_to_ptr.vmem [resolvable:$true] %s314
          %320 = dma.hbm_to_vmem [thread:$0]  %s313, 1536, %s315, [#allocation16], 64, 64, 4
        $region24: #{tpu_custom_call.1} parent=11 // pred_fallthru
          _
        // Predicated region
        $region25: #{tpu_custom_call.1} parent=11 // pred_check
          %p321 = pneg %p168
        $region26: #{tpu_custom_call.1} parent=11 // pred_check_branch
          %323 = sbr.rel (%p321) target = $region28
        $region27: #{tpu_custom_call.1} parent=11 // pred_region
          _
        $region28: #{tpu_custom_call.1} parent=11 // pred_fallthru
          _
        // Predicated region
        $region29: #{tpu_custom_call.1} parent=11 // pred_check
          %p324 = pneg %p189
        $region30: #{tpu_custom_call.1} parent=11 // pred_check_branch
          %326 = sbr.rel (%p324) target = $region32
        $region31: #{tpu_custom_call.1} parent=11 // pred_region
          %328 = vsyncadd [#allocation19], 0
          %s329 = sshll.u32 %s6, 4
          %s330 = int_to_ptr.hbm [resolvable:$true] %s329
          %s331 = sshll.u32 [#allocation18], 4
          %s332 = int_to_ptr.vmem [resolvable:$true] %s331
          %337 = dma.hbm_to_vmem [thread:$0]  %s330, 96, %s332, [#allocation19], 16, 16, 1
        $region32: #{tpu_custom_call.1} parent=11 // pred_fallthru
          _
      $region12: #{tpu_custom_call.1} parent=5 // pred_fallthru
        _
      %p338 = scmp.lt.s32.totalorder %s30, 2
      // Predicated region
      $region33: #{tpu_custom_call.1} parent=5 // pred_check
        %p339 = pneg %p338
      $region34: #{tpu_custom_call.1} parent=5 // pred_check_branch
        %341 = sbr.rel (%p339) target = $region36
      $region35: #{tpu_custom_call.1} parent=5 // pred_region
        // Predicated region
        $region37: #{tpu_custom_call.1} parent=35 // pred_check
          %p342 = pneg %p50
        $region38: #{tpu_custom_call.1} parent=35 // pred_check_branch
          %344 = sbr.rel (%p342) target = $region40
        $region39: #{tpu_custom_call.1} parent=35 // pred_region
          %s345 = sand.u32 %s40, 1
          %s346 = scalar_lea.sflag [#allocation10], %s345
          %s347 = sand.u32 %s40, 1
          %s348 = smul.addr %s347, 8
          %s349 = scalar_lea.vmem [#allocation9], %s348
          %s350 = smul.u32 4, %s30
          %352 = vsyncadd %s346, 0
          %s353 = smul.addr %s350, 2
          %s354 = scalar_lea.hbm %s0, %s353
          %s355 = sshll.u32 %s354, 4
          %s356 = int_to_ptr.hbm [resolvable:$true] %s355
          %s357 = sshll.u32 %s349, 4
          %s358 = int_to_ptr.vmem [resolvable:$true] %s357
          %363 = dma.hbm_to_vmem [thread:$0]  %s356, 128, %s358, %s346, 32, 32, 2
        $region40: #{tpu_custom_call.1} parent=35 // pred_fallthru
          _
        // Predicated region
        $region41: #{tpu_custom_call.1} parent=35 // pred_check
          %p364 = pneg %p78
        $region42: #{tpu_custom_call.1} parent=35 // pred_check_branch
          %366 = sbr.rel (%p364) target = $region44
        $region43: #{tpu_custom_call.1} parent=35 // pred_region
          %s367 = sand.u32 %s30, 1
          %s368 = scalar_lea.sflag [#allocation13], %s367
          %s369 = sand.u32 %s68, 1
          %s370 = smul.addr %s369, 8
          %s371 = scalar_lea.vmem [#allocation12], %s370
          %s372 = ssub.s32 1, %s30
          %s373 = smul.u32 4, %s372
          %375 = vsyncadd %s368, 0
          %s376 = smul.addr %s373, 2
          %s377 = scalar_lea.hbm %s1, %s376
          %s378 = sshll.u32 %s377, 4
          %s379 = int_to_ptr.hbm [resolvable:$true] %s378
          %s380 = sshll.u32 %s371, 4
          %s381 = int_to_ptr.vmem [resolvable:$true] %s380
          %386 = dma.hbm_to_vmem [thread:$0]  %s379, 128, %s381, %s368, 32, 32, 2
        $region44: #{tpu_custom_call.1} parent=35 // pred_fallthru
          _
      $region36: #{tpu_custom_call.1} parent=5 // pred_fallthru
        _
      %p387 = scmp.le.s32.totalorder 1, %s30
      %p388 = scmp.lt.s32.totalorder %s30, 3
      %p389 = pnand %p387, %p388
      %p390 = pneg %p389
      // Predicated region
      $region45: #{tpu_custom_call.1} parent=5 // pred_check
        _
      $region46: #{tpu_custom_call.1} parent=5 // pred_check_branch
        %392 = sbr.rel (%p389) target = $region48
      $region47: #{tpu_custom_call.1} parent=5 // pred_region
        %s393 = ssub.s32 %s30, 1
        %s394 = sand.u32 %s43, 1
        %s395 = scalar_lea.sflag [#allocation10], %s394
        %s396 = sand.u32 %s43, 1
        %s397 = smul.addr %s396, 8
        %s398 = scalar_lea.vmem [#allocation9], %s397
        // Predicated region
        $region49: #{tpu_custom_call.1} parent=47 // pred_check
          %p399 = pneg %p56
        $region50: #{tpu_custom_call.1} parent=47 // pred_check_branch
          %401 = sbr.rel (%p399) target = $region52
        $region51: #{tpu_custom_call.1} parent=47 // pred_region
          %403 = dma.done %s395, 128
        $region52: #{tpu_custom_call.1} parent=47 // pred_fallthru
          _
        %s404 = sand.u32 %s35, 1
        %s405 = scalar_lea.sflag [#allocation13], %s404
        %s406 = sand.u32 %s71, 1
        %s407 = smul.addr %s406, 8
        %s408 = scalar_lea.vmem [#allocation12], %s407
        // Predicated region
        $region53: #{tpu_custom_call.1} parent=47 // pred_check
          %p409 = pneg %p84
        $region54: #{tpu_custom_call.1} parent=47 // pred_check_branch
          %411 = sbr.rel (%p409) target = $region56
        $region55: #{tpu_custom_call.1} parent=47 // pred_region
          %413 = dma.done %s405, 128
        $region56: #{tpu_custom_call.1} parent=47 // pred_fallthru
          _
        // Predicated region
        $region57: #{tpu_custom_call.1} parent=47 // pred_check
          %p414 = pneg %p105
        $region58: #{tpu_custom_call.1} parent=47 // pred_check_branch
          %416 = sbr.rel (%p414) target = $region60
        $region59: #{tpu_custom_call.1} parent=47 // pred_region
          %418 = dma.done [#allocation13], 64
        $region60: #{tpu_custom_call.1} parent=47 // pred_fallthru
          _
        // Predicated region
        $region61: #{tpu_custom_call.1} parent=47 // pred_check
          %p419 = pneg %p126
        $region62: #{tpu_custom_call.1} parent=47 // pred_check_branch
          %421 = sbr.rel (%p419) target = $region64
        $region63: #{tpu_custom_call.1} parent=47 // pred_region
          %423 = dma.done [#allocation16], 256
        $region64: #{tpu_custom_call.1} parent=47 // pred_fallthru
          _
        // Predicated region
        $region65: #{tpu_custom_call.1} parent=47 // pred_check
          %p424 = pneg %p147
        $region66: #{tpu_custom_call.1} parent=47 // pred_check_branch
          %426 = sbr.rel (%p424) target = $region68
        $region67: #{tpu_custom_call.1} parent=47 // pred_region
          %428 = dma.done [#allocation16], 1536
        $region68: #{tpu_custom_call.1} parent=47 // pred_fallthru
          _
        // Predicated region
        $region69: #{tpu_custom_call.1} parent=47 // pred_check
          %p429 = pneg %p189
        $region70: #{tpu_custom_call.1} parent=47 // pred_check_branch
          %431 = sbr.rel (%p429) target = $region72
        $region71: #{tpu_custom_call.1} parent=47 // pred_region
          %433 = dma.done [#allocation19], 96
        $region72: #{tpu_custom_call.1} parent=47 // pred_fallthru
          _
        %s434 = sand.u32 %s43, 1
        %s435 = scalar_lea.sflag [#allocation10], %s434
        %s436 = sand.u32 %s43, 1
        %s437 = smul.addr %s436, 8
        %s438 = scalar_lea.vmem [#allocation9], %s437
        %p439 = pneg %p56
        %p440 = pneg %p53
        %s441 = sand.u32 %s35, 1
        %s442 = scalar_lea.sflag [#allocation13], %s441
        %s443 = sand.u32 %s71, 1
        %s444 = smul.addr %s443, 8
        %s445 = scalar_lea.vmem [#allocation12], %s444
        %p446 = pneg %p84
        %p447 = pneg %p81
        %p448 = pneg %p105
        %p449 = pneg %p102
        %p450 = pneg %p126
        %p451 = pneg %p123
        %p452 = pneg %p147
        %p453 = pneg %p144
        %p454 = pneg %p168
        %p455 = pneg %p165
        %p456 = pneg %p189
        %p457 = pneg %p186
        %p458 = pneg %p215
        %p459 = pneg %p212
        %s460 = sand.u32 %s202, 1
        %s461 = scalar_lea.sflag [#allocation11], %s460
        %s462 = sand.u32 %s202, 1
        %s463 = smul.addr %s462, 4
        %s464 = scalar_lea.vmem [#allocation20], %s463
        %p465 = pneg %p243
        %p466 = pneg %p240
        %s467 = sand.u32 %s35, 1
        %s468 = scalar_lea.sflag [#allocation22], %s467
        %s469 = sand.u32 %s230, 1
        %s470 = smul.addr %s469, 4
        %s471 = scalar_lea.vmem [#allocation21], %s470
        %p472 = pneg %p264
        %p473 = pneg %p261
        %s474 = smul.u32 4, %s35
        %s475 = ssub.s32 1, %s35
        %s476 = smul.u32 4, %s475
        %s477 = smul.u32 4, %s35
        %s478 = ssub.s32 1, %s35
        %s479 = smul.u32 4, %s478
        %p481 = scmp.eq.s32.totalorder %s35, 0
        // Predicated region
        $region73: #{tpu_custom_call.1} parent=47 // pred_check
          %p482 = pneg %p481
        $region74: #{tpu_custom_call.1} parent=47 // pred_check_branch
          %484 = sbr.rel (%p482) target = $region76
        $region75: #{tpu_custom_call.1} parent=47 // pred_region
          %v485 = vld [vmem:[#allocation14] sm:$0x3]
          %v486 = vld [vmem:[#allocation14 + $0x2] sm:$0x3]
          %vm487 = vcmask 254976
          %488 = vst.msk [vmem:[#allocation2] sm:$0x3] %vm487, %v485
          %489 = vst.msk [vmem:[#allocation2 + $0x2] sm:$0x3] %vm487, %v486
        $region76: #{tpu_custom_call.1} parent=47 // pred_fallthru
          _
        %v490 = vld [vmem:[%s5] sm:$0x1]
        %v491 = vld [vmem:[%s5 + $0x1] sm:$0x1]
        %v492 = vld [vmem:[#allocation18] sm:$0x1]
        %v493 = vld [vmem:[#allocation18 + $0x1] sm:$0x1]
        %v494 = vld [vmem:[#allocation18 + $0x2] sm:$0x1]
        %v495 = vld [vmem:[#allocation18 + $0x3] sm:$0x1]
        %v496 = vld [vmem:[#allocation18 + $0x4] sm:$0x1]
        %v497 = vld [vmem:[#allocation18 + $0x5] sm:$0x1]
        %v498 = vld [vmem:[#allocation15] sm:$0xf]
        %v499 = vld [vmem:[#allocation15 + $0x4] sm:$0xf]
        %v500 = vld [vmem:[%s398] sm:$0x3]
        %v501 = vld [vmem:[%s398 + $0x2] sm:$0x3]
        %v502 = vld [vmem:[%s398 + $0x4] sm:$0x3]
        %v503 = vld [vmem:[%s398 + $0x6] sm:$0x3]
        %508 = vst [vmem:[#allocation1] ss:$4 sm:$0xff] %v500
        %s509 = scalar_lea.vmem [#allocation1], 1
        %510 = vst [vmem:[%s509] ss:$4 sm:$0xff] %v501
        %s511 = scalar_lea.vmem [#allocation1], 2
        %512 = vst [vmem:[%s511] ss:$4 sm:$0xff] %v502
        %s513 = scalar_lea.vmem [#allocation1], 3
        %514 = vst [vmem:[%s513] ss:$4 sm:$0xff] %v503
        %v515 = vld.sshfl [vmem:[#allocation1] sm:$0xff pattern:$0x73625140]
        %v517 = vpack.c.bf16 %v515, %v515
        %v519 = vperm.slane %v490, 0
        %v523 = vunpack.c.l.b16 %v498
        %v524 = vunpack.c.l.b16 %v499
        %v525 = vpack.c.b16 %v524, %v523
        %vm527 = vcmask 130048
        %v529 = vsel %vm527, %v517, 0
        %531 = vmatpush.bf16.msra.mxu0 0
        %532 = vmatpush.bf16.msra.mxu0 0
        %533 = vmatpush.bf16.msra.mxu0 0
        %534 = vmatpush.bf16.msra.mxu0 0
        %535 = vmatpush.bf16.msra.mxu0 0
        %536 = vmatpush.bf16.msra.mxu0 0
        %537 = vmatpush.bf16.msra.mxu0 0
        %538 = vmatpush.bf16.msra.mxu0 %v525
        %539 = vmatmul.bf16.gmra.mxu0 %v529
        %v540 = vpop.f32.mrf.mxu0
        %v541 = vadd.f32 %v519, %v540
        %v542 = vpop.f32.mrf.mxu0
        %543 = vdwg.mxu0
        %v545 = vrot.slane %v541, 2
        %v546 = vrot.slane %v541, 4
        %v547 = vrot.slane %v541, 6
        %vm551 = vcmask 254976
        %552 = vst.msk [vmem:[#allocation3] sm:$0x3] %vm551, %v541
        %553 = vst.msk [vmem:[#allocation3 + $0x2] sm:$0x3] %vm551, %v545
        %554 = vst.msk [vmem:[#allocation3 + $0x4] sm:$0x3] %vm551, %v546
        %555 = vst.msk [vmem:[#allocation3 + $0x6] sm:$0x3] %vm551, %v547
        %556 = vst [vmem:[#allocation1] ss:$4 sm:$0xff] %v541
        %v557 = vld.sshfl [vmem:[#allocation1] sm:$0xff pattern:$0x73625140]
        %s558 = scalar_lea.vmem [#allocation1], 32
        %559 = vst [vmem:[%s558] ss:$4 sm:$0xff] %v545
        %v560 = vld.sshfl [vmem:[#allocation1 + $0x20] sm:$0xff pattern:$0x73625140]
        %561 = vst [vmem:[#allocation1] ss:$4 sm:$0xff] %v546
        %v562 = vld.sshfl [vmem:[#allocation1] sm:$0xff pattern:$0x73625140]
        %563 = vst [vmem:[%s558] ss:$4 sm:$0xff] %v547
        %v564 = vld.sshfl [vmem:[#allocation1 + $0x20] sm:$0xff pattern:$0x73625140]
        %565 = vrot.lane.b32.xlu0 %v557, 96
        %v566 = vpop.permute.xlu0 %565
        %567 = vrot.lane.b32.xlu0 %v560, 96
        %v568 = vpop.permute.xlu0 %567
        %569 = vrot.lane.b32.xlu0 %v562, 96
        %v570 = vpop.permute.xlu0 %569
        %571 = vrot.lane.b32.xlu0 %v564, 96
        %v572 = vpop.permute.xlu0 %571
        %577 = vst.msk [vmem:[#allocation4] sm:$0x3] %vm551, %v566
        %578 = vst.msk [vmem:[#allocation4 + $0x2] sm:$0x3] %vm551, %v568
        %579 = vst.msk [vmem:[#allocation4 + $0x4] sm:$0x3] %vm551, %v570
        %580 = vst.msk [vmem:[#allocation4 + $0x6] sm:$0x3] %vm551, %v572
        %581 = vst [vmem:[#allocation1] ss:$4 sm:$0xff] %v541
        %v582 = vld.sshfl [vmem:[#allocation1] sm:$0xff pattern:$0x73625140]
        %s583 = scalar_lea.vmem [#allocation1], 32
        %584 = vst [vmem:[%s583] ss:$4 sm:$0xff] %v545
        %v585 = vld.sshfl [vmem:[#allocation1 + $0x20] sm:$0xff pattern:$0x73625140]
        %586 = vst [vmem:[#allocation1] ss:$4 sm:$0xff] %v546
        %v587 = vld.sshfl [vmem:[#allocation1] sm:$0xff pattern:$0x73625140]
        %588 = vst [vmem:[%s583] ss:$4 sm:$0xff] %v547
        %v589 = vld.sshfl [vmem:[#allocation1 + $0x20] sm:$0xff pattern:$0x73625140]
        %590 = vrot.lane.b32.xlu0 %v582, 64
        %v591 = vpop.permute.xlu0 %590
        %592 = vrot.lane.b32.xlu0 %v585, 64
        %v593 = vpop.permute.xlu0 %592
        %594 = vrot.lane.b32.xlu0 %v587, 64
        %v595 = vpop.permute.xlu0 %594
        %596 = vrot.lane.b32.xlu0 %v589, 64
        %v597 = vpop.permute.xlu0 %596
        %602 = vst.msk [vmem:[#allocation5] sm:$0x3] %vm551, %v591
        %603 = vst.msk [vmem:[#allocation5 + $0x2] sm:$0x3] %vm551, %v593
        %604 = vst.msk [vmem:[#allocation5 + $0x4] sm:$0x3] %vm551, %v595
        %605 = vst.msk [vmem:[#allocation5 + $0x6] sm:$0x3] %vm551, %v597
        %s606 = scalar_lea.vmem [#allocation15], 8
        %v607 = vld [vmem:[%s606] sm:$0xf]
        %v608 = vld [vmem:[%s606 + $0x4] sm:$0xf]
        %v609 = vld [vmem:[%s408] sm:$0x3]
        %v610 = vld [vmem:[%s408 + $0x2] sm:$0x3]
        %v611 = vld [vmem:[%s408 + $0x4] sm:$0x3]
        %v612 = vld [vmem:[%s408 + $0x6] sm:$0x3]
        %617 = vst [vmem:[#allocation1] ss:$4 sm:$0xff] %v609
        %s618 = scalar_lea.vmem [#allocation1], 1
        %619 = vst [vmem:[%s618] ss:$4 sm:$0xff] %v610
        %s620 = scalar_lea.vmem [#allocation1], 2
        %621 = vst [vmem:[%s620] ss:$4 sm:$0xff] %v611
        %s622 = scalar_lea.vmem [#allocation1], 3
        %623 = vst [vmem:[%s622] ss:$4 sm:$0xff] %v612
        %v624 = vld.sshfl [vmem:[#allocation1] sm:$0xff pattern:$0x73625140]
        %v626 = vpack.c.bf16 %v624, %v624
        %v628 = vperm.slane %v491, 0
        %v632 = vunpack.c.l.b16 %v607
        %v633 = vunpack.c.l.b16 %v608
        %v634 = vpack.c.b16 %v633, %v632
        %v637 = vsel %vm527, %v626, 0
        %639 = vmatpush.bf16.msra.mxu0 0
        %640 = vmatpush.bf16.msra.mxu0 0
        %641 = vmatpush.bf16.msra.mxu0 0
        %642 = vmatpush.bf16.msra.mxu0 0
        %643 = vmatpush.bf16.msra.mxu0 0
        %644 = vmatpush.bf16.msra.mxu0 0
        %645 = vmatpush.bf16.msra.mxu0 0
        %646 = vmatpush.bf16.msra.mxu0 %v634
        %647 = vmatmul.bf16.gmra.mxu0 %v637
        %v648 = vpop.f32.mrf.mxu0
        %v649 = vadd.f32 %v628, %v648
        %v650 = vpop.f32.mrf.mxu0
        %651 = vdwg.mxu0
        %v653 = vrot.slane %v649, 2
        %v654 = vrot.slane %v649, 4
        %v655 = vrot.slane %v649, 6
        %659 = vst.msk [vmem:[#allocation6] sm:$0x3] %vm551, %v649
        %660 = vst.msk [vmem:[#allocation6 + $0x2] sm:$0x3] %vm551, %v653
        %661 = vst.msk [vmem:[#allocation6 + $0x4] sm:$0x3] %vm551, %v654
        %662 = vst.msk [vmem:[#allocation6 + $0x6] sm:$0x3] %vm551, %v655
        %663 = vst [vmem:[#allocation1] ss:$4 sm:$0xff] %v649
        %v664 = vld.sshfl [vmem:[#allocation1] sm:$0xff pattern:$0x73625140]
        %s665 = scalar_lea.vmem [#allocation1], 32
        %666 = vst [vmem:[%s665] ss:$4 sm:$0xff] %v653
        %v667 = vld.sshfl [vmem:[#allocation1 + $0x20] sm:$0xff pattern:$0x73625140]
        %668 = vst [vmem:[#allocation1] ss:$4 sm:$0xff] %v654
        %v669 = vld.sshfl [vmem:[#allocation1] sm:$0xff pattern:$0x73625140]
        %670 = vst [vmem:[%s665] ss:$4 sm:$0xff] %v655
        %v671 = vld.sshfl [vmem:[#allocation1 + $0x20] sm:$0xff pattern:$0x73625140]
        %672 = vrot.lane.b32.xlu0 %v664, 96
        %v673 = vpop.permute.xlu0 %672
        %674 = vrot.lane.b32.xlu0 %v667, 96
        %v675 = vpop.permute.xlu0 %674
        %676 = vrot.lane.b32.xlu0 %v669, 96
        %v677 = vpop.permute.xlu0 %676
        %678 = vrot.lane.b32.xlu0 %v671, 96
        %v679 = vpop.permute.xlu0 %678
        %684 = vst.msk [vmem:[#allocation7] sm:$0x3] %vm551, %v673
        %685 = vst.msk [vmem:[#allocation7 + $0x2] sm:$0x3] %vm551, %v675
        %686 = vst.msk [vmem:[#allocation7 + $0x4] sm:$0x3] %vm551, %v677
        %687 = vst.msk [vmem:[#allocation7 + $0x6] sm:$0x3] %vm551, %v679
        %688 = vst [vmem:[#allocation1] ss:$4 sm:$0xff] %v649
        %v689 = vld.sshfl [vmem:[#allocation1] sm:$0xff pattern:$0x73625140]
        %s690 = scalar_lea.vmem [#allocation1], 32
        %691 = vst [vmem:[%s690] ss:$4 sm:$0xff] %v653
        %v692 = vld.sshfl [vmem:[#allocation1 + $0x20] sm:$0xff pattern:$0x73625140]
        %693 = vst [vmem:[#allocation1] ss:$4 sm:$0xff] %v654
        %v694 = vld.sshfl [vmem:[#allocation1] sm:$0xff pattern:$0x73625140]
        %695 = vst [vmem:[%s690] ss:$4 sm:$0xff] %v655
        %v696 = vld.sshfl [vmem:[#allocation1 + $0x20] sm:$0xff pattern:$0x73625140]
        %697 = vrot.lane.b32.xlu0 %v689, 64
        %v698 = vpop.permute.xlu0 %697
        %699 = vrot.lane.b32.xlu0 %v692, 64
        %v700 = vpop.permute.xlu0 %699
        %701 = vrot.lane.b32.xlu0 %v694, 64
        %v702 = vpop.permute.xlu0 %701
        %703 = vrot.lane.b32.xlu0 %v696, 64
        %v704 = vpop.permute.xlu0 %703
        %709 = vst.msk [vmem:[#allocation8] sm:$0x3] %vm551, %v698
        %710 = vst.msk [vmem:[#allocation8 + $0x2] sm:$0x3] %vm551, %v700
        %711 = vst.msk [vmem:[#allocation8 + $0x4] sm:$0x3] %vm551, %v702
        %712 = vst.msk [vmem:[#allocation8 + $0x6] sm:$0x3] %vm551, %v704
        %v713 = vld [vmem:[#allocation17] sm:$0xf]
        %v714 = vld [vmem:[#allocation17 + $0x4] sm:$0xf]
        %v715 = vld [vmem:[#allocation17 + $0x8] sm:$0xf]
        %v716 = vld [vmem:[#allocation17 + $0xc] sm:$0xf]
        %s717 = scalar_lea.vmem [#allocation17], 16
        %v718 = vld [vmem:[%s717] sm:$0xf]
        %v719 = vld [vmem:[%s717 + $0x4] sm:$0xf]
        %v720 = vld [vmem:[%s717 + $0x8] sm:$0xf]
        %v721 = vld [vmem:[%s717 + $0xc] sm:$0xf]
        %s722 = scalar_lea.vmem [#allocation17], 32
        %v723 = vld [vmem:[%s722] sm:$0xf]
        %v724 = vld [vmem:[%s722 + $0x4] sm:$0xf]
        %v725 = vld [vmem:[%s722 + $0x8] sm:$0xf]
        %v726 = vld [vmem:[%s722 + $0xc] sm:$0xf]
        %s727 = scalar_lea.vmem [#allocation17], 48
        %v728 = vld [vmem:[%s727] sm:$0xf]
        %v729 = vld [vmem:[%s727 + $0x4] sm:$0xf]
        %v730 = vld [vmem:[%s727 + $0x8] sm:$0xf]
        %v731 = vld [vmem:[%s727 + $0xc] sm:$0xf]
        %s732 = scalar_lea.vmem [#allocation17], 64
        %v733 = vld [vmem:[%s732] sm:$0xf]
        %v734 = vld [vmem:[%s732 + $0x4] sm:$0xf]
        %v735 = vld [vmem:[%s732 + $0x8] sm:$0xf]
        %v736 = vld [vmem:[%s732 + $0xc] sm:$0xf]
        %s737 = scalar_lea.vmem [#allocation17], 80
        %v738 = vld [vmem:[%s737] sm:$0xf]
        %v739 = vld [vmem:[%s737 + $0x4] sm:$0xf]
        %v740 = vld [vmem:[%s737 + $0x8] sm:$0xf]
        %v741 = vld [vmem:[%s737 + $0xc] sm:$0xf]
        %v743 = vperm.slane %v492, 0
        %v746 = vperm.slane %v493, 0
        %v749 = vperm.slane %v494, 0
        %v752 = vperm.slane %v495, 0
        %v755 = vperm.slane %v496, 0
        %v758 = vperm.slane %v497, 0
        %v760 = vld [vmem:[#allocation2] sm:$0x3]
        %s761 = scalar_lea.vmem [#allocation2], 2
        %v762 = vld [vmem:[%s761] sm:$0x3]
        loop: start=0, step=1, limit=4
        $region77: #{tpu_custom_call.1} parent=47 // loop_pre_header
          _
        $region78: #{tpu_custom_call.1} parent=47 // loop_header
          %s764 = sphi 0, %s768
          %p765 = scmp.ge.s32.totalorder %s764, 4
          %v769 = vphi %v760, %v905
          %v770 = vphi %v762, %v1038
        $region79: #{tpu_custom_call.1} parent=47 // loop_header_branch
          %767 = sbr.rel (%p765) target = $region83
        $region80: #{tpu_custom_call.1} parent=47 // loop_body
          %s771 = ssub.s32 3, %s764
          %s772 = smul.u32 %s764, 2
          %s773 = scalar_lea.vmem [#allocation3], %s772
          %v774 = vld [vmem:[%s773] sm:$0x3]
          %s775 = scalar_lea.vmem [#allocation4], %s772
          %v776 = vld [vmem:[%s775] sm:$0x3]
          %s777 = scalar_lea.vmem [#allocation5], %s772
          %v778 = vld [vmem:[%s777] sm:$0x3]
          %v779 = vpack.c.bf16 %v769, %v769
          %v784 = vunpack.c.l.b16 %v713
          %v785 = vunpack.c.l.b16 %v714
          %v786 = vunpack.c.l.b16 %v715
          %v787 = vunpack.c.l.b16 %v716
          %v788 = vpack.c.b16 %v785, %v784
          %v789 = vpack.c.b16 %v787, %v786
          %vm792 = vcmask 261120
          %v794 = vsel %vm792, %v779, 0
          %796 = vmatpush.bf16.msra.mxu0 0
          %797 = vmatpush.bf16.msra.mxu0 0
          %798 = vmatpush.bf16.msra.mxu0 0
          %799 = vmatpush.bf16.msra.mxu0 0
          %800 = vmatpush.bf16.msra.mxu0 0
          %801 = vmatpush.bf16.msra.mxu0 0
          %802 = vmatpush.bf16.msra.mxu0 %v789
          %803 = vmatpush.bf16.msra.mxu0 %v788
          %804 = vmatmul.bf16.gmra.mxu0 %v794
          %v805 = vpop.f32.mrf.mxu0
          %v806 = vadd.f32 %v743, %v805
          %v807 = vpop.f32.mrf.mxu0
          %808 = vdwg.mxu0
          %v813 = vunpack.c.l.b16 %v718
          %v814 = vunpack.c.l.b16 %v719
          %v815 = vunpack.c.l.b16 %v720
          %v816 = vunpack.c.l.b16 %v721
          %v817 = vpack.c.b16 %v814, %v813
          %v818 = vpack.c.b16 %v816, %v815
          %821 = vmatpush.bf16.msra.mxu0 0
          %822 = vmatpush.bf16.msra.mxu0 0
          %823 = vmatpush.bf16.msra.mxu0 0
          %824 = vmatpush.bf16.msra.mxu0 0
          %825 = vmatpush.bf16.msra.mxu0 0
          %826 = vmatpush.bf16.msra.mxu0 0
          %827 = vmatpush.bf16.msra.mxu0 %v818
          %828 = vmatpush.bf16.msra.mxu0 %v817
          %829 = vmatmul.bf16.gmra.mxu0 %v794
          %v830 = vpop.f32.mrf.mxu0
          %v831 = vadd.f32 %v746, %v830
          %v832 = vpop.f32.mrf.mxu0
          %833 = vdwg.mxu0
          %v838 = vunpack.c.l.b16 %v723
          %v839 = vunpack.c.l.b16 %v724
          %v840 = vunpack.c.l.b16 %v725
          %v841 = vunpack.c.l.b16 %v726
          %v842 = vpack.c.b16 %v839, %v838
          %v843 = vpack.c.b16 %v841, %v840
          %846 = vmatpush.bf16.msra.mxu0 0
          %847 = vmatpush.bf16.msra.mxu0 0
          %848 = vmatpush.bf16.msra.mxu0 0
          %849 = vmatpush.bf16.msra.mxu0 0
          %850 = vmatpush.bf16.msra.mxu0 0
          %851 = vmatpush.bf16.msra.mxu0 0
          %852 = vmatpush.bf16.msra.mxu0 %v843
          %853 = vmatpush.bf16.msra.mxu0 %v842
          %854 = vmatmul.bf16.gmra.mxu0 %v794
          %v855 = vpop.f32.mrf.mxu0
          %v856 = vadd.f32 %v749, %v855
          %v857 = vpop.f32.mrf.mxu0
          %858 = vdwg.mxu0
          %v859 = vadd.f32 %v774, %v806
          %v860 = vxor.u32 %v859, 2147483648
          %v861 = vmul.f32 %v860, 1.442695
          %v862 = vpow.pop %v861
          %v863 = vadd.f32 %v862, 1.0
          %v864 = vrcp.pop %v863
          %v865 = vmul.f32 %v863, %v864
          %v866 = vsub.f32 1.0, %v865
          %v867 = vmul.f32 %v864, %v866
          %v868 = vadd.f32 %v864, %v867
          %vm869 = vweird.f32 %v863
          %vm870 = vweird.f32 %v864
          %vm871 = vmor %vm869, %vm870
          %v872 = vsel %vm871, %v864, %v868
          %v873 = vand.u32 2147483647, %v863
          %vm874 = vcmp.eq.f32.partialorder %v873, 8.507059e+37
          %v875 = vand.u32 %v863, 2147483648
          %v876 = vor.u32 1.1754944e-38, %v875
          %v877 = vsel %vm874, %v876, %v872
          %v878 = vmul.f32 1.0, %v877
          %v879 = vadd.f32 %v776, %v831
          %v880 = vxor.u32 %v879, 2147483648
          %v881 = vmul.f32 %v880, 1.442695
          %v882 = vpow.pop %v881
          %v883 = vadd.f32 %v882, 1.0
          %v884 = vrcp.pop %v883
          %v885 = vmul.f32 %v883, %v884
          %v886 = vsub.f32 1.0, %v885
          %v887 = vmul.f32 %v884, %v886
          %v888 = vadd.f32 %v884, %v887
          %vm889 = vweird.f32 %v883
          %vm890 = vweird.f32 %v884
          %vm891 = vmor %vm889, %vm890
          %v892 = vsel %vm891, %v884, %v888
          %v893 = vand.u32 2147483647, %v883
          %vm894 = vcmp.eq.f32.partialorder %v893, 8.507059e+37
          %v895 = vand.u32 %v883, 2147483648
          %v896 = vor.u32 1.1754944e-38, %v895
          %v897 = vsel %vm894, %v896, %v892
          %v898 = vmul.f32 1.0, %v897
          %v899 = vmul.f32 %v878, %v856
          %v900 = vadd.f32 %v778, %v899
          %v901 = vtanh.pop %v900
          %v902 = vsub.f32 1.0, %v898
          %v903 = vmul.f32 %v902, %v901
          %v904 = vmul.f32 %v898, %v769
          %v905 = vadd.f32 %v903, %v904
          %s906 = smul.u32 %s771, 2
          %s907 = scalar_lea.vmem [#allocation6], %s906
          %v908 = vld [vmem:[%s907] sm:$0x3]
          %s909 = scalar_lea.vmem [#allocation7], %s906
          %v910 = vld [vmem:[%s909] sm:$0x3]
          %s911 = scalar_lea.vmem [#allocation8], %s906
          %v912 = vld [vmem:[%s911] sm:$0x3]
          %v913 = vpack.c.bf16 %v770, %v770
          %v918 = vunpack.c.l.b16 %v728
          %v919 = vunpack.c.l.b16 %v729
          %v920 = vunpack.c.l.b16 %v730
          %v921 = vunpack.c.l.b16 %v731
          %v922 = vpack.c.b16 %v919, %v918
          %v923 = vpack.c.b16 %v921, %v920
          %v927 = vsel %vm792, %v913, 0
          %929 = vmatpush.bf16.msra.mxu0 0
          %930 = vmatpush.bf16.msra.mxu0 0
          %931 = vmatpush.bf16.msra.mxu0 0
          %932 = vmatpush.bf16.msra.mxu0 0
          %933 = vmatpush.bf16.msra.mxu0 0
          %934 = vmatpush.bf16.msra.mxu0 0
          %935 = vmatpush.bf16.msra.mxu0 %v923
          %936 = vmatpush.bf16.msra.mxu0 %v922
          %937 = vmatmul.bf16.gmra.mxu0 %v927
          %v938 = vpop.f32.mrf.mxu0
          %v939 = vadd.f32 %v752, %v938
          %v940 = vpop.f32.mrf.mxu0
          %941 = vdwg.mxu0
          %v946 = vunpack.c.l.b16 %v733
          %v947 = vunpack.c.l.b16 %v734
          %v948 = vunpack.c.l.b16 %v735
          %v949 = vunpack.c.l.b16 %v736
          %v950 = vpack.c.b16 %v947, %v946
          %v951 = vpack.c.b16 %v949, %v948
          %954 = vmatpush.bf16.msra.mxu0 0
          %955 = vmatpush.bf16.msra.mxu0 0
          %956 = vmatpush.bf16.msra.mxu0 0
          %957 = vmatpush.bf16.msra.mxu0 0
          %958 = vmatpush.bf16.msra.mxu0 0
          %959 = vmatpush.bf16.msra.mxu0 0
          %960 = vmatpush.bf16.msra.mxu0 %v951
          %961 = vmatpush.bf16.msra.mxu0 %v950
          %962 = vmatmul.bf16.gmra.mxu0 %v927
          %v963 = vpop.f32.mrf.mxu0
          %v964 = vadd.f32 %v755, %v963
          %v965 = vpop.f32.mrf.mxu0
          %966 = vdwg.mxu0
          %v971 = vunpack.c.l.b16 %v738
          %v972 = vunpack.c.l.b16 %v739
          %v973 = vunpack.c.l.b16 %v740
          %v974 = vunpack.c.l.b16 %v741
          %v975 = vpack.c.b16 %v972, %v971
          %v976 = vpack.c.b16 %v974, %v973
          %979 = vmatpush.bf16.msra.mxu0 0
          %980 = vmatpush.bf16.msra.mxu0 0
          %981 = vmatpush.bf16.msra.mxu0 0
          %982 = vmatpush.bf16.msra.mxu0 0
          %983 = vmatpush.bf16.msra.mxu0 0
          %984 = vmatpush.bf16.msra.mxu0 0
          %985 = vmatpush.bf16.msra.mxu0 %v976
          %986 = vmatpush.bf16.msra.mxu0 %v975
          %987 = vmatmul.bf16.gmra.mxu0 %v927
          %v988 = vpop.f32.mrf.mxu0
          %v989 = vadd.f32 %v758, %v988
          %v990 = vpop.f32.mrf.mxu0
          %991 = vdwg.mxu0
          %v992 = vadd.f32 %v908, %v939
          %v993 = vxor.u32 %v992, 2147483648
          %v994 = vmul.f32 %v993, 1.442695
          %v995 = vpow.pop %v994
          %v996 = vadd.f32 %v995, 1.0
          %v997 = vrcp.pop %v996
          %v998 = vmul.f32 %v996, %v997
          %v999 = vsub.f32 1.0, %v998
          %v1000 = vmul.f32 %v997, %v999
          %v1001 = vadd.f32 %v997, %v1000
          %vm1002 = vweird.f32 %v996
          %vm1003 = vweird.f32 %v997
          %vm1004 = vmor %vm1002, %vm1003
          %v1005 = vsel %vm1004, %v997, %v1001
          %v1006 = vand.u32 2147483647, %v996
          %vm1007 = vcmp.eq.f32.partialorder %v1006, 8.507059e+37
          %v1008 = vand.u32 %v996, 2147483648
          %v1009 = vor.u32 1.1754944e-38, %v1008
          %v1010 = vsel %vm1007, %v1009, %v1005
          %v1011 = vmul.f32 1.0, %v1010
          %v1012 = vadd.f32 %v910, %v964
          %v1013 = vxor.u32 %v1012, 2147483648
          %v1014 = vmul.f32 %v1013, 1.442695
          %v1015 = vpow.pop %v1014
          %v1016 = vadd.f32 %v1015, 1.0
          %v1017 = vrcp.pop %v1016
          %v1018 = vmul.f32 %v1016, %v1017
          %v1019 = vsub.f32 1.0, %v1018
          %v1020 = vmul.f32 %v1017, %v1019
          %v1021 = vadd.f32 %v1017, %v1020
          %vm1022 = vweird.f32 %v1016
          %vm1023 = vweird.f32 %v1017
          %vm1024 = vmor %vm1022, %vm1023
          %v1025 = vsel %vm1024, %v1017, %v1021
          %v1026 = vand.u32 2147483647, %v1016
          %vm1027 = vcmp.eq.f32.partialorder %v1026, 8.507059e+37
          %v1028 = vand.u32 %v1016, 2147483648
          %v1029 = vor.u32 1.1754944e-38, %v1028
          %v1030 = vsel %vm1027, %v1029, %v1025
          %v1031 = vmul.f32 1.0, %v1030
          %v1032 = vmul.f32 %v1011, %v989
          %v1033 = vadd.f32 %v912, %v1032
          %v1034 = vtanh.pop %v1033
          %v1035 = vsub.f32 1.0, %v1031
          %v1036 = vmul.f32 %v1035, %v1034
          %v1037 = vmul.f32 %v1031, %v770
          %v1038 = vadd.f32 %v1036, %v1037
          %v1039 = vpack.c.bf16 %v905, %v905
          %s1040 = scalar_lea.vmem %s464, %s764 [#allocation20]
          %vm1041 = vcmask 253952
          %1042 = vst.msk [vmem:[%s1040] sm:$0x1] %vm1041, %v1039
          %v1043 = vpack.c.bf16 %v1038, %v1038
          %s1044 = scalar_lea.vmem %s471, %s771 [#allocation21]
          %1045 = vst.msk [vmem:[%s1044] sm:$0x1] %vm1041, %v1043
        $region81: #{tpu_custom_call.1} parent=47 // loop_footer
          %s768 = sadd.s32 1, %s764
        $region82: #{tpu_custom_call.1} parent=47 // loop_footer_branch
          %763 = sbr.rel target = $region78
        $region83: #{tpu_custom_call.1} parent=47 // loop_exit
          _
        %1046 = vst.msk [vmem:[#allocation2] sm:$0x3] %vm551, %v769
        %1047 = vst.msk [vmem:[%s761] sm:$0x3] %vm551, %v770
        %1048 = vst.msk [vmem:[#allocation23] sm:$0x3] %vm551, %v769
        %s1049 = scalar_lea.vmem [#allocation23], 2
        %1050 = vst.msk [vmem:[%s1049] sm:$0x3] %vm551, %v770
        %s1051 = sand.u32 %s202, 1
        %s1052 = scalar_lea.sflag [#allocation11], %s1051
        %s1053 = sand.u32 %s202, 1
        %s1054 = smul.addr %s1053, 4
        %s1055 = scalar_lea.vmem [#allocation20], %s1054
        %s1056 = sand.u32 %s35, 1
        %s1057 = scalar_lea.sflag [#allocation22], %s1056
        %s1058 = sand.u32 %s230, 1
        %s1059 = smul.addr %s1058, 4
        %s1060 = scalar_lea.vmem [#allocation21], %s1059
        // Predicated region
        $region84: #{tpu_custom_call.1} parent=47 // pred_check
          %p1061 = pneg %p212
        $region85: #{tpu_custom_call.1} parent=47 // pred_check_branch
          %1063 = sbr.rel (%p1061) target = $region87
        $region86: #{tpu_custom_call.1} parent=47 // pred_region
          %s1064 = smul.u32 4, %s35
          %1066 = vsyncadd %s1052, 0
          %s1067 = scalar_lea.hbm %s7, %s1064
          %s1068 = sshll.u32 %s1055, 4
          %s1069 = int_to_ptr.vmem [resolvable:$true] %s1068
          %s1070 = sshll.u32 %s1067, 4
          %s1071 = int_to_ptr.hbm [resolvable:$true] %s1070
          %1076 = dma.vmem_to_hbm [thread:$0]  %s1069, 64, %s1071, %s1052, 16, 16, 1
        $region87: #{tpu_custom_call.1} parent=47 // pred_fallthru
          _
        // Predicated region
        $region88: #{tpu_custom_call.1} parent=47 // pred_check
          %p1077 = pneg %p240
        $region89: #{tpu_custom_call.1} parent=47 // pred_check_branch
          %1079 = sbr.rel (%p1077) target = $region91
        $region90: #{tpu_custom_call.1} parent=47 // pred_region
          %s1080 = ssub.s32 1, %s35
          %s1081 = smul.u32 4, %s1080
          %1083 = vsyncadd %s1057, 0
          %s1084 = scalar_lea.hbm %s8, %s1081
          %s1085 = sshll.u32 %s1060, 4
          %s1086 = int_to_ptr.vmem [resolvable:$true] %s1085
          %s1087 = sshll.u32 %s1084, 4
          %s1088 = int_to_ptr.hbm [resolvable:$true] %s1087
          %1093 = dma.vmem_to_hbm [thread:$0]  %s1086, 64, %s1088, %s1057, 16, 16, 1
        $region91: #{tpu_custom_call.1} parent=47 // pred_fallthru
          _
        // Predicated region
        $region92: #{tpu_custom_call.1} parent=47 // pred_check
          %p1094 = pneg %p261
        $region93: #{tpu_custom_call.1} parent=47 // pred_check_branch
          %1096 = sbr.rel (%p1094) target = $region95
        $region94: #{tpu_custom_call.1} parent=47 // pred_region
          %1098 = vsyncadd [#allocation22], 0
          %s1099 = sshll.u32 [#allocation23], 4
          %s1100 = int_to_ptr.vmem [resolvable:$true] %s1099
          %s1101 = sshll.u32 %s9, 4
          %s1102 = int_to_ptr.hbm [resolvable:$true] %s1101
          %1107 = dma.vmem_to_hbm [thread:$0]  %s1100, 64, %s1102, [#allocation22], 32, 32, 2
        $region95: #{tpu_custom_call.1} parent=47 // pred_fallthru
          _
        // Predicated region
        $region96: #{tpu_custom_call.1} parent=47 // pred_check
          %p1108 = pneg %p261
        $region97: #{tpu_custom_call.1} parent=47 // pred_check_branch
          %1110 = sbr.rel (%p1108) target = $region99
        $region98: #{tpu_custom_call.1} parent=47 // pred_region
          %1112 = dma.done [#allocation22], 64
        $region99: #{tpu_custom_call.1} parent=47 // pred_fallthru
          _
      $region48: #{tpu_custom_call.1} parent=5 // pred_fallthru
        _
      %p1113 = scmp.le.s32.totalorder 2, %s30
      // Predicated region
      $region100: #{tpu_custom_call.1} parent=5 // pred_check
        %p1114 = pneg %p1113
      $region101: #{tpu_custom_call.1} parent=5 // pred_check_branch
        %1116 = sbr.rel (%p1114) target = $region103
      $region102: #{tpu_custom_call.1} parent=5 // pred_region
        %s1117 = ssub.s32 %s30, 2
        // Predicated region
        $region104: #{tpu_custom_call.1} parent=102 // pred_check
          %p1118 = pneg %p218
        $region105: #{tpu_custom_call.1} parent=102 // pred_check_branch
          %1120 = sbr.rel (%p1118) target = $region107
        $region106: #{tpu_custom_call.1} parent=102 // pred_region
          %s1121 = sand.u32 %s203, 1
          %s1122 = scalar_lea.sflag [#allocation11], %s1121
          %s1123 = sand.u32 %s203, 1
          %s1124 = smul.addr %s1123, 4
          %s1125 = scalar_lea.vmem [#allocation20], %s1124
          %1127 = dma.done %s1122, 64
        $region107: #{tpu_custom_call.1} parent=102 // pred_fallthru
          _
        // Predicated region
        $region108: #{tpu_custom_call.1} parent=102 // pred_check
          %p1128 = pneg %p246
        $region109: #{tpu_custom_call.1} parent=102 // pred_check_branch
          %1130 = sbr.rel (%p1128) target = $region111
        $region110: #{tpu_custom_call.1} parent=102 // pred_region
          %s1131 = sand.u32 %s36, 1
          %s1132 = scalar_lea.sflag [#allocation22], %s1131
          %s1133 = sand.u32 %s231, 1
          %s1134 = smul.addr %s1133, 4
          %s1135 = scalar_lea.vmem [#allocation21], %s1134
          %1137 = dma.done %s1132, 64
        $region111: #{tpu_custom_call.1} parent=102 // pred_fallthru
          _
      $region103: #{tpu_custom_call.1} parent=5 // pred_fallthru
        _
    $region6: #{tpu_custom_call.1} parent=1 // loop_footer
      %s34 = sadd.s32 1, %s30
    $region7: #{tpu_custom_call.1} parent=1 // loop_footer_branch
      %29 = sbr.rel target = $region3
    $region8: #{tpu_custom_call.1} parent=1 // loop_exit
      _
    %1138 = vsyncpa [#allocation10], 1
    %s1139 = scalar_lea.sflag [#allocation10], 1
    %1140 = vsyncpa %s1139, 1
    %1141 = vsyncpa [#allocation13], 1
    %s1142 = scalar_lea.sflag [#allocation13], 1
    %1143 = vsyncpa %s1142, 1
    %1144 = vsyncpa [#allocation16], 1
    %1145 = vsyncpa [#allocation19], 1
    %1146 = vsyncpa [#allocation11], 1
    %s1147 = scalar_lea.sflag [#allocation11], 1
    %1148 = vsyncpa %s1147, 1
    %1149 = vsyncpa [#allocation22], 1
    %s1150 = scalar_lea.sflag [#allocation22], 1
    %1151 = vsyncpa %s1150, 1

</llo_original>
